<compile_context>
chip_gen: v6e
topology: v6e:2x2x1
jax: 0.10.0
libtpu: 0.0.40
codegen_flags: <defaults>
</compile_context>

<pallas_src>
import jax
import jax.numpy as jnp
import numpy as np
from jax.experimental import pallas as pl
from jax.experimental.pallas import tpu as pltpu


def _round_up(x, m):
    return -(-x // m) * m


def _make_mha_kernel(num_heads: int, head_dim: int):
    H, D = num_heads, head_dim

    def kernel(x_ref, wqkv_ref, bqkv_ref, wo_ref, bo_ref, mrow_ref, out_ref):
        TB, S, E = x_ref.shape
        M = TB * S            # flattened (batch, seq) rows
        G = H * TB            # flattened (head, batch) attention groups

        x2 = x_ref[...].reshape(M, E)                          # bf16 (M, E)

        # Fused QKV projection: one MXU launch, softmax scale pre-folded into
        # the Q columns / Q bias in the wrapper.
        qkv = jnp.dot(x2, wqkv_ref[...],
                      preferred_element_type=jnp.float32)
        qkv = (qkv + bqkv_ref[...]).astype(jnp.bfloat16)       # (M, 3E)

        # (M, 3E) -> (M, 3H, D) -> (3H, M, D): a single lane-layout-aware
        # relayout replaces 3*H sub-lane column slices + stack.
        qkv = pltpu.einshape("mhd->hmd", qkv.reshape(M, 3 * H, D))
        qkv = qkv.reshape(3, H, TB, S, D)

        def grp(t):
            # (H, TB, S, D) -> (H*TB, S, D); group index g = h*TB + b.
            return qkv[t].reshape(G, S, D)

        qg, kg, vg = grp(0), grp(1), grp(2)                    # bf16 (G, S, D)

        # Additive key-padding bias (0 valid, -1e9 padded), replicated per head
        # with the same g = h*TB + b ordering.
        kb = (mrow_ref[...] - 1.0) * 1e9                       # (TB, 1, S) f32
        kbg = jnp.broadcast_to(kb[None], (H, TB, 1, S)).reshape(G, 1, S)

        # Batched attention over the (head, batch) axis; bf16 MXU, f32 acc.
        s = jnp.einsum('gqd,gkd->gqk', qg, kg,
                       preferred_element_type=jnp.float32) + kbg   # (G, S, S)
        m = jnp.max(s, axis=-1, keepdims=True)
        p = jnp.exp(s - m)                                     # f32 (v5e-safe)
        l = jnp.sum(p, axis=-1, keepdims=True)
        # bf16 cast fused into the PV matmul operand (no long-lived f32 copy
        # of p is needed past this point).
        ctx = jnp.einsum('gqk,gkd->gqd', p.astype(jnp.bfloat16), vg,
                         preferred_element_type=jnp.float32)   # (G, S, D) f32
        ctx = (ctx * pl.reciprocal(l, approx=True)).astype(jnp.bfloat16)

        # (H*TB, S, D) -> (H, M, D) -> (M, H, D) -> (M, H*D): one relayout,
        # then ONE output-projection matmul with full contraction depth K = E.
        ctx = pltpu.einshape("hmd->mhd", ctx.reshape(H, M, D)).reshape(M, E)
        o = jnp.dot(ctx, wo_ref[...],
                    preferred_element_type=jnp.float32).reshape(TB, S, E)

        # Query-row mask derived in-kernel from the key mask (self-attention:
        # query padding == key padding); zero padded query rows (pad_input
        # semantics) before adding the out-proj bias.
        qmask = jnp.swapaxes(mrow_ref[...], -1, -2)            # (TB, S, 1)
        out_ref[...] = o * qmask + bo_ref[...]

    return kernel


def _pick_batch_tile(B, S, E, H):
    """Batch elements per grid step: ~2 grid steps for small problems (keeps
    both v7x TensorCores busy, amortizes ~0.35us/step pipeline overhead),
    capped so the per-step score tensors stay well inside VMEM."""
    if B <= 1:
        return max(B, 1)
    sp = _round_up(S, 8)
    sl = _round_up(S, 128)
    score_bytes_per_batch = H * sp * sl * 4 * 3        # s + p + headroom
    budget = 24 * 2 ** 20
    tb = max(1, min(B // 2, budget // max(score_bytes_per_batch, 1)))
    while B % tb:
        tb -= 1
    return tb


def _vmem_limit_bytes(TB, S, E, H, D):
    """Scoped-VMEM hint derived from the actual resident set (padded to
    (8,128)/(16,128) tiles), clamped to the 64 MiB v7x physical VMEM."""
    sp = _round_up(S, 8)
    sl = _round_up(S, 128)
    ep = _round_up(E, 128)
    e3p = _round_up(3 * E, 128)
    dl = _round_up(D, 128)
    er = _round_up(E, 16)
    m = _round_up(TB * S, 16)
    G = H * TB
    weights = er * e3p * 2 + er * ep * 2 + 8 * e3p * 4 + 8 * ep * 4  # 1-buffered
    io_blocks = 2 * (TB * sp * ep * (2 + 4)) + 2 * (TB * 8 * sl * 4)
    scratch = (m * e3p * (4 + 2)            # qkv f32 + bf16
               + 3 * G * sp * dl * 2        # q/k/v groups (bf16, lane-padded D)
               + G * sp * sl * (4 + 4 + 2)  # s, p, p->bf16 operand
               + G * sp * dl * (4 + 2)      # ctx f32 + bf16
               + m * ep * (2 + 4))          # ctx slab + o
    total = weights + io_blocks + 2 * scratch
    return int(min(max(total, 16 * 2 ** 20), 64 * 2 ** 20))


def _mha_pallas_fn(B, S, E, H, D, TB, single_buffer_weights):
    kernel = _make_mha_kernel(H, D)

    def const_spec(shape):
        kwargs = {}
        if single_buffer_weights:
            # Grid-invariant weights/biases: a single VMEM buffer is enough.
            kwargs["pipeline_mode"] = pl.Buffered(1)
        return pl.BlockSpec(shape, lambda b: (0,) * len(shape), **kwargs)

    x_spec = pl.BlockSpec((TB, S, E), lambda b: (b, 0, 0))
    out_spec = pl.BlockSpec((TB, S, E), lambda b: (b, 0, 0))
    mrow_spec = pl.BlockSpec((TB, 1, S), lambda b: (b, 0, 0))

    return pl.pallas_call(
        kernel,
        out_shape=jax.ShapeDtypeStruct((B, S, E), jnp.float32),
        grid_spec=pltpu.PrefetchScalarGridSpec(
            num_scalar_prefetch=0,
            grid=(B // TB,),
            in_specs=[x_spec,
                      const_spec((E, 3 * E)), const_spec((1, 3 * E)),
                      const_spec((E, E)), const_spec((1, E)),
                      mrow_spec],
            out_specs=out_spec,
        ),
        compiler_params=pltpu.CompilerParams(
            dimension_semantics=("parallel",),
            vmem_limit_bytes=_vmem_limit_bytes(TB, S, E, H, D)),
    )


def multihead_self_attention_pallas(x, key_padding_mask, params, num_heads):
    """x: (B, S, E) f32 (query = key = value); key_padding_mask: (B, S) bool, True = pad."""
    B, S, E = x.shape
    H = num_heads
    assert E % H == 0
    D = E // H
    scaling = float(D) ** -0.5
    wq, bq, wk, bk, wv, bv, wo, bo = params

    # Fused (E, 3E) QKV weight, softmax scale folded into the Q slice.
    # Column order is [q|k|v] x [head] x [d] so a single in-kernel reshape
    # recovers the heads. Weights shipped bf16 (MXU-native), biases f32.
    wqkv = jnp.concatenate([wq.T * scaling, wk.T, wv.T],
                           axis=1).astype(jnp.bfloat16)
    bqkv = jnp.concatenate([bq * scaling, bk, bv]).reshape(1, 3 * E)
    bqkv = bqkv.astype(jnp.float32)
    wo_flat = wo.T.astype(jnp.bfloat16)            # (H*D, E), rows in (h d) order
    bo2 = bo.reshape(1, E).astype(jnp.float32)

    # Module casts q/k/v to fp16 in eval mode -> ship x bf16 (halves x DMA).
    xb = x.astype(jnp.bfloat16)
    # Key-validity mask, 1.0 = valid token, lane-dense layout (B, 1, S).
    mrow = (~key_padding_mask).astype(jnp.float32).reshape(B, 1, S)

    TB = _pick_batch_tile(B, S, E, H)
    args = (xb, wqkv, bqkv, wo_flat, bo2, mrow)
    try:
        return _mha_pallas_fn(B, S, E, H, D, TB, True)(*args)
    except Exception as e:
        # Only retry when the failure looks related to the single-buffered
        # (pl.Buffered(1)) weight specs; anything unrelated is re-raised
        # (and would also re-raise from the fallback call below).
        msg = str(e).lower()
        if ("buffer" not in msg) and ("pipeline" not in msg):
            raise
        return _mha_pallas_fn(B, S, E, H, D, TB, False)(*args)


def multihead_attention_reference(query, key, value, key_padding_mask, params,
                                  num_heads):
    """Pure-JAX reference mirroring the PyTorch forward (eval, dropout=0)."""
    wq, bq, wk, bk, wv, bv, wo, bo = params
    B, S, E = query.shape
    D = E // num_heads
    q = (query @ wq.T + bq).reshape(B, S, num_heads, D)
    k = (key @ wk.T + bk).reshape(B, S, num_heads, D)
    v = (value @ wv.T + bv).reshape(B, S, num_heads, D)
    scale = float(D) ** -0.5
    s = jnp.einsum('bqhd,bkhd->bhqk', q, k) * scale
    s = s + jnp.where(key_padding_mask[:, None, None, :], -1e9, 0.0)
    p = jax.nn.softmax(s, axis=-1)
    ctx = jnp.einsum('bhqk,bkhd->bqhd', p, v).reshape(B, S, E)
    ctx = ctx * (~key_padding_mask)[:, :, None].astype(ctx.dtype)
    return ctx @ wo.T + bo


if __name__ == "__main__":
    B, S, E, H = 2, 8, 32, 4

    root = jax.random.PRNGKey(0)
    keys = jax.random.split(root, 12)

    def xavier(k, shape, gain=1.0):
        fan_in, fan_out = shape[1], shape[0]
        limit = gain * np.sqrt(6.0 / (fan_in + fan_out))
        return jax.random.uniform(k, shape, jnp.float32, -limit, limit)

    g = 1.0 / np.sqrt(2.0)
    params = (
        xavier(keys[0], (E, E), g), jax.random.normal(keys[1], (E,)) * 0.02,   # q_proj
        xavier(keys[2], (E, E), g), jax.random.normal(keys[3], (E,)) * 0.02,   # k_proj
        xavier(keys[4], (E, E), g), jax.random.normal(keys[5], (E,)) * 0.02,   # v_proj
        xavier(keys[6], (E, E), 1.0), jnp.zeros((E,), jnp.float32),            # out_proj
    )

    x = jax.random.normal(keys[7], (B, S, E), jnp.float32)

    # True = padding (PyTorch key_padding_mask convention); last 3 tokens of
    # batch 1 are padded, batch 0 has no padding.
    key_padding_mask = jnp.array(
        [[False] * S,
         [False] * (S - 3) + [True] * 3], dtype=bool)

    out = multihead_self_attention_pallas(x, key_padding_mask, params, H)
    out = jax.block_until_ready(out)

    ref = multihead_attention_reference(x, x, x, key_padding_mask, params, H)
    # bf16 MXU operands (matching the module's eval-time fp16 cast) + approx
    # reciprocal => loosened tolerance.
    np.testing.assert_allclose(np.asarray(out), np.asarray(ref),
                               rtol=3e-2, atol=3e-2)
    print("KERNEL_OK")
</pallas_src>

<mosaic_0001>
module attributes {stable_mosaic.version = 11 : i64} {
  func.func @kernel(%arg0: i32, %arg1: memref<1x8x32xbf16, #tpu.memory_space<vmem>>, %arg2: memref<32x96xbf16, #tpu.memory_space<vmem>>, %arg3: memref<1x96xf32, #tpu.memory_space<vmem>>, %arg4: memref<32x32xbf16, #tpu.memory_space<vmem>>, %arg5: memref<1x32xf32, #tpu.memory_space<vmem>>, %arg6: memref<1x1x8xf32, #tpu.memory_space<vmem>>, %arg7: memref<1x8x32xf32, #tpu.memory_space<vmem>>) attributes {dimension_semantics = [#tpu.dimension_semantics<parallel>], iteration_bounds = array<i64: 2>, scalar_prefetch = 0 : i64, scratch_operands = 0 : i64, tpu.core_type = #tpu.core_type<tc>, window_params = [{transform_indices = @transform_0, window_bounds = array<i64: 1, 8, 32>}, {pipeline_mode = #tpu.pipeline_mode<synchronous>, transform_indices = @transform_1, window_bounds = array<i64: 32, 96>}, {pipeline_mode = #tpu.pipeline_mode<synchronous>, transform_indices = @transform_2, window_bounds = array<i64: 1, 96>}, {pipeline_mode = #tpu.pipeline_mode<synchronous>, transform_indices = @transform_3, window_bounds = array<i64: 32, 32>}, {pipeline_mode = #tpu.pipeline_mode<synchronous>, transform_indices = @transform_4, window_bounds = array<i64: 1, 32>}, {transform_indices = @transform_5, window_bounds = array<i64: 1, 1, 8>}, {transform_indices = @transform_6, window_bounds = array<i64: 1, 8, 32>}]} {
    %c0 = arith.constant 0 : index
    %c0_0 = arith.constant 0 : index
    %c0_1 = arith.constant 0 : index
    %0 = vector.load %arg1[%c0, %c0_0, %c0_1] : memref<1x8x32xbf16, #tpu.memory_space<vmem>>, vector<1x8x32xbf16>
    %1 = vector.shape_cast %0 : vector<1x8x32xbf16> to vector<8x32xbf16>
    %c0_2 = arith.constant 0 : index
    %c0_3 = arith.constant 0 : index
    %2 = vector.load %arg2[%c0_2, %c0_3] : memref<32x96xbf16, #tpu.memory_space<vmem>>, vector<32x96xbf16>
    %cst = arith.constant dense<0.000000e+00> : vector<8x96xf32>
    %3 = tpu.matmul %1, %2, %cst {dimension_numbers = #tpu.dot_dimension_numbers<[1], [0], [0], [1], [0, 0, 1, 1], [], []>} : vector<8x32xbf16>, vector<32x96xbf16>, vector<8x96xf32> -> vector<8x96xf32>
    %c0_4 = arith.constant 0 : index
    %c0_5 = arith.constant 0 : index
    %4 = vector.load %arg3[%c0_4, %c0_5] : memref<1x96xf32, #tpu.memory_space<vmem>>, vector<1x96xf32>
    %5 = vector.broadcast %4 : vector<1x96xf32> to vector<8x96xf32>
    %6 = arith.addf %3, %5 : vector<8x96xf32>
    %7 = arith.truncf %6 : vector<8x96xf32> to vector<8x96xbf16>
    %8 = vector.shape_cast %7 : vector<8x96xbf16> to vector<8x12x8xbf16>
    %9 = tpu.transpose %8, [1, 0, 2] : vector<8x12x8xbf16> -> vector<12x8x8xbf16>
    %10 = vector.shape_cast %9 : vector<12x8x8xbf16> to vector<3x4x1x8x8xbf16>
    %11 = vector.extract_strided_slice %10 {offsets = [0, 0, 0, 0, 0], sizes = [1, 4, 1, 8, 8], strides = [1, 1, 1, 1, 1]} : vector<3x4x1x8x8xbf16> to vector<1x4x1x8x8xbf16>
    %12 = vector.shape_cast %11 : vector<1x4x1x8x8xbf16> to vector<4x1x8x8xbf16>
    %13 = vector.shape_cast %12 : vector<4x1x8x8xbf16> to vector<4x8x8xbf16>
    %14 = vector.extract_strided_slice %10 {offsets = [1, 0, 0, 0, 0], sizes = [1, 4, 1, 8, 8], strides = [1, 1, 1, 1, 1]} : vector<3x4x1x8x8xbf16> to vector<1x4x1x8x8xbf16>
    %15 = vector.shape_cast %14 : vector<1x4x1x8x8xbf16> to vector<4x1x8x8xbf16>
    %16 = vector.shape_cast %15 : vector<4x1x8x8xbf16> to vector<4x8x8xbf16>
    %17 = vector.extract_strided_slice %10 {offsets = [2, 0, 0, 0, 0], sizes = [1, 4, 1, 8, 8], strides = [1, 1, 1, 1, 1]} : vector<3x4x1x8x8xbf16> to vector<1x4x1x8x8xbf16>
    %18 = vector.shape_cast %17 : vector<1x4x1x8x8xbf16> to vector<4x1x8x8xbf16>
    %19 = vector.shape_cast %18 : vector<4x1x8x8xbf16> to vector<4x8x8xbf16>
    %c0_6 = arith.constant 0 : index
    %c0_7 = arith.constant 0 : index
    %c0_8 = arith.constant 0 : index
    %20 = vector.load %arg6[%c0_6, %c0_7, %c0_8] : memref<1x1x8xf32, #tpu.memory_space<vmem>>, vector<1x1x8xf32>
    %cst_9 = arith.constant 1.000000e+00 : f32
    %21 = vector.broadcast %cst_9 : f32 to vector<1x1x8xf32>
    %22 = arith.subf %20, %21 : vector<1x1x8xf32>
    %cst_10 = arith.constant 1.000000e+09 : f32
    %23 = vector.broadcast %cst_10 : f32 to vector<1x1x8xf32>
    %24 = arith.mulf %22, %23 : vector<1x1x8xf32>
    %25 = vector.shape_cast %24 : vector<1x1x8xf32> to vector<1x1x1x8xf32>
    %26 = vector.shape_cast %25 : vector<1x1x1x8xf32> to vector<1x1x1x8xf32>
    %27 = vector.broadcast %26 : vector<1x1x1x8xf32> to vector<4x1x1x8xf32>
    %28 = vector.shape_cast %27 : vector<4x1x1x8xf32> to vector<4x1x8xf32>
    "tpu.trace_start"() <{level = 10 : i32, message = "gqd,gkd->gqk"}> : () -> ()
    %cst_11 = arith.constant dense<0.000000e+00> : vector<4x8x8xf32>
    %29 = tpu.matmul %13, %16, %cst_11 {dimension_numbers = #tpu.dot_dimension_numbers<[2], [2], [1], [1], [0, 0, 0, 1, 1, 1], [0], [0]>} : vector<4x8x8xbf16>, vector<4x8x8xbf16>, vector<4x8x8xf32> -> vector<4x8x8xf32>
    "tpu.trace_stop"() : () -> ()
    %30 = vector.broadcast %28 : vector<4x1x8xf32> to vector<4x8x8xf32>
    %31 = arith.addf %29, %30 : vector<4x8x8xf32>
    %cst_12 = arith.constant dense<0xFF800000> : vector<4x8xf32>
    %32 = vector.multi_reduction <maximumf>, %31, %cst_12 [2] : vector<4x8x8xf32> to vector<4x8xf32>
    %33 = vector.shape_cast %32 : vector<4x8xf32> to vector<4x8x1xf32>
    %34 = vector.broadcast %33 : vector<4x8x1xf32> to vector<4x8x8xf32>
    %35 = arith.subf %31, %34 : vector<4x8x8xf32>
    %36 = math.exp %35 : vector<4x8x8xf32>
    %cst_13 = arith.constant dense<0.000000e+00> : vector<4x8xf32>
    %37 = vector.multi_reduction <add>, %36, %cst_13 [2] : vector<4x8x8xf32> to vector<4x8xf32>
    %38 = vector.shape_cast %37 : vector<4x8xf32> to vector<4x8x1xf32>
    %39 = arith.truncf %36 : vector<4x8x8xf32> to vector<4x8x8xbf16>
    "tpu.trace_start"() <{level = 10 : i32, message = "gqk,gkd->gqd"}> : () -> ()
    %cst_14 = arith.constant dense<0.000000e+00> : vector<4x8x8xf32>
    %40 = tpu.matmul %39, %19, %cst_14 {dimension_numbers = #tpu.dot_dimension_numbers<[2], [1], [1], [2], [0, 0, 0, 1, 1, 2], [0], [0]>} : vector<4x8x8xbf16>, vector<4x8x8xbf16>, vector<4x8x8xf32> -> vector<4x8x8xf32>
    "tpu.trace_stop"() : () -> ()
    %41 = tpu.reciprocal %38 {approx = true} : vector<4x8x1xf32> -> vector<4x8x1xf32>
    %42 = vector.broadcast %41 : vector<4x8x1xf32> to vector<4x8x8xf32>
    %43 = arith.mulf %40, %42 : vector<4x8x8xf32>
    %44 = arith.truncf %43 : vector<4x8x8xf32> to vector<4x8x8xbf16>
    %45 = tpu.transpose %44, [1, 0, 2] : vector<4x8x8xbf16> -> vector<8x4x8xbf16>
    %46 = vector.shape_cast %45 : vector<8x4x8xbf16> to vector<8x32xbf16>
    %c0_15 = arith.constant 0 : index
    %c0_16 = arith.constant 0 : index
    %47 = vector.load %arg4[%c0_15, %c0_16] : memref<32x32xbf16, #tpu.memory_space<vmem>>, vector<32x32xbf16>
    %cst_17 = arith.constant dense<0.000000e+00> : vector<8x32xf32>
    %48 = tpu.matmul %46, %47, %cst_17 {dimension_numbers = #tpu.dot_dimension_numbers<[1], [0], [0], [1], [0, 0, 1, 1], [], []>} : vector<8x32xbf16>, vector<32x32xbf16>, vector<8x32xf32> -> vector<8x32xf32>
    %49 = vector.shape_cast %48 : vector<8x32xf32> to vector<1x8x32xf32>
    %c0_18 = arith.constant 0 : index
    %c0_19 = arith.constant 0 : index
    %c0_20 = arith.constant 0 : index
    %50 = vector.load %arg6[%c0_18, %c0_19, %c0_20] : memref<1x1x8xf32, #tpu.memory_space<vmem>>, vector<1x1x8xf32>
    %51 = tpu.transpose %50, [0, 2, 1] : vector<1x1x8xf32> -> vector<1x8x1xf32>
    %52 = vector.broadcast %51 : vector<1x8x1xf32> to vector<1x8x32xf32>
    %53 = arith.mulf %49, %52 : vector<1x8x32xf32>
    %c0_21 = arith.constant 0 : index
    %c0_22 = arith.constant 0 : index
    %54 = vector.load %arg5[%c0_21, %c0_22] : memref<1x32xf32, #tpu.memory_space<vmem>>, vector<1x32xf32>
    %55 = vector.shape_cast %54 : vector<1x32xf32> to vector<1x1x32xf32>
    %56 = vector.broadcast %55 : vector<1x1x32xf32> to vector<1x8x32xf32>
    %57 = arith.addf %53, %56 : vector<1x8x32xf32>
    %c0_23 = arith.constant 0 : index
    %c0_24 = arith.constant 0 : index
    %c0_25 = arith.constant 0 : index
    %58 = vector.load %arg7[%c0_23, %c0_24, %c0_25] : memref<1x8x32xf32, #tpu.memory_space<vmem>>, vector<1x8x32xf32>
    tpu.vector_store %arg7[%c0_23, %c0_24, %c0_25], %57 {strides = array<i32>} : memref<1x8x32xf32, #tpu.memory_space<vmem>>, vector<1x8x32xf32>,
    return
  }
  func.func @transform_0(%arg0: i32) -> (i32, i32, i32) {
    %c0_i32 = arith.constant 0 : i32
    %c0_i32_0 = arith.constant 0 : i32
    %c0_i32_1 = arith.constant 0 : i32
    return %arg0, %c0_i32, %c0_i32_0 : i32, i32, i32
  }
  func.func @transform_1(%arg0: i32) -> (i32, i32) {
    %c0_i32 = arith.constant 0 : i32
    %c0_i32_0 = arith.constant 0 : i32
    %c0_i32_1 = arith.constant 0 : i32
    return %c0_i32, %c0_i32_0 : i32, i32
  }
  func.func @transform_2(%arg0: i32) -> (i32, i32) {
    %c0_i32 = arith.constant 0 : i32
    %c0_i32_0 = arith.constant 0 : i32
    %c0_i32_1 = arith.constant 0 : i32
    return %c0_i32, %c0_i32_0 : i32, i32
  }
  func.func @transform_3(%arg0: i32) -> (i32, i32) {
    %c0_i32 = arith.constant 0 : i32
    %c0_i32_0 = arith.constant 0 : i32
    %c0_i32_1 = arith.constant 0 : i32
    return %c0_i32, %c0_i32_0 : i32, i32
  }
  func.func @transform_4(%arg0: i32) -> (i32, i32) {
    %c0_i32 = arith.constant 0 : i32
    %c0_i32_0 = arith.constant 0 : i32
    %c0_i32_1 = arith.constant 0 : i32
    return %c0_i32, %c0_i32_0 : i32, i32
  }
  func.func @transform_5(%arg0: i32) -> (i32, i32, i32) {
    %c0_i32 = arith.constant 0 : i32
    %c0_i32_0 = arith.constant 0 : i32
    %c0_i32_1 = arith.constant 0 : i32
    return %arg0, %c0_i32, %c0_i32_0 : i32, i32, i32
  }
  func.func @transform_6(%arg0: i32) -> (i32, i32, i32) {
    %c0_i32 = arith.constant 0 : i32
    %c0_i32_0 = arith.constant 0 : i32
    %c0_i32_1 = arith.constant 0 : i32
    return %arg0, %c0_i32, %c0_i32_0 : i32, i32, i32
  }
}

</mosaic_0001>

<llo_original>
// kernel: tpu_custom_call.1
$region0: #{tpu_custom_call.1}
  #allocation0 [shape = 'u32[]', space=smem, size = 0x4, offset = 0x4, fixed_abs, tag = 'smem constant byte address 0x4 - core index']
  #allocation1 [shape = 'u32[144,128]{1,0:T(1,128)}', space=vmem, size = 0x12000, scoped, tag = 'internal scratch']
  %s0 = inlined_call_operand.hbm [shape: bf16[2,8,32], index: 0, kind: input, shape index: {}]
  %s1 = inlined_call_operand.hbm [shape: bf16[32,96], index: 1, kind: input, shape index: {}]
  %s2 = inlined_call_operand.vmem [shape: f32[1,96], index: 2, kind: input, shape index: {}]
  %s3 = inlined_call_operand.hbm [shape: bf16[32,32], index: 3, kind: input, shape index: {}]
  %s4 = inlined_call_operand.vmem [shape: f32[1,32], index: 4, kind: input, shape index: {}]
  %s5 = inlined_call_operand.vmem [shape: f32[2,1,8], index: 5, kind: input, shape index: {}]
  %s6 = inlined_call_operand.hbm [shape: f32[2,8,32], index: 6, kind: output, shape index: {}]
  %s7 = sld [smem:[#allocation0]]
  $region69: #{tpu_custom_call.1} parent=0
    _
  %s9 = ssub.s32 1, %s7
  %s10 = scalar_select 0, %s9, %s7
  $region1: #{tpu_custom_call.1} parent=0
    #allocation2 [shape = 'u8[4096]{0}', space=vmem, size = 0x1000, scoped, tag = 'input window, operand 0']
    #allocation3 [shape = 's32[2]{0}', space=sflag, size = 0x8, scoped, tag = 'scoped memory for tpu_custom_call.1']
    #allocation4 [shape = 's32[2]{0}', space=sflag, size = 0x8, scoped, tag = 'scoped memory for tpu_custom_call.1']
    #allocation5 [shape = 'u8[8192]{0}', space=vmem, size = 0x2000, scoped, tag = 'input window, operand 1, single buffered']
    #allocation6 [shape = 's32[1]{0}', space=sflag, size = 0x4, scoped, tag = 'scoped memory for tpu_custom_call.1']
    #allocation7 [shape = 'u8[8192]{0}', space=vmem, size = 0x2000, scoped, tag = 'input window, operand 3, single buffered']
    #allocation8 [shape = 'u8[8192]{0}', space=vmem, size = 0x2000, scoped, tag = 'output window, operand 0']
    %11 = vsyncpa [#allocation3], 0
    %s12 = scalar_lea.sflag [#allocation3], 1
    %13 = vsyncpa %s12, 0
    %14 = vsyncpa [#allocation6], 0
    %15 = vsyncpa [#allocation4], 0
    %s16 = scalar_lea.sflag [#allocation4], 1
    %17 = vsyncpa %s16, 0
    loop: start=0, step=1, limit=4
    $region2: #{tpu_custom_call.1} parent=1 // loop_pre_header
      _
    $region3: #{tpu_custom_call.1} parent=1 // loop_header
      %s19 = sphi 0, %s23
      %p20 = scmp.ge.s32.totalorder %s19, 4
      %s29 = sphi 0, %s31
      %s32 = sphi 0, %s29
      %s33 = sphi 0, %s32
      %s49 = sphi 0, %s33
      %s53 = sphi 0, %s53
      %s55 = sphi 0, %s53
      %s56 = sphi 0, %s55
      %s70 = sphi 0, %s56
      %s74 = sphi 0, %s74
      %s76 = sphi 0, %s74
      %s77 = sphi 0, %s76
      %s91 = sphi 0, %s77
      %s95 = sphi 0, %s95
      %s97 = sphi 0, %s95
      %s98 = sphi 0, %s97
      %s112 = sphi 0, %s98
      %s116 = sphi 0, %s116
      %s118 = sphi 0, %s116
      %s119 = sphi 0, %s118
      %s133 = sphi 0, %s119
      %s139 = sphi 0, %s141
      %s142 = sphi 0, %s139
      %s143 = sphi 0, %s142
      %s159 = sphi 0, %s143
      %s165 = sphi 0, %s167
      %s168 = sphi 0, %s165
      %s169 = sphi 0, %s168
      %s185 = sphi 0, %s169
    $region4: #{tpu_custom_call.1} parent=1 // loop_header_branch
      %22 = sbr.rel (%p20) target = $region8
    $region5: #{tpu_custom_call.1} parent=1 // loop_body
      %s24 = ssub.s32 %s19, 1
      %s25 = ssub.s32 %s19, 2
      %s26 = sadd.s32 %s19, 1
      %s27 = ssub.s32 %s19, %s26
      %p28 = scmp.eq.s32.totalorder %s27, 0
      %s30 = sadd.s32 %s29, 1
      %s31 = scalar_select %p28, %s29, %s30
      %p34 = pneg %p28
      %p35 = scmp.eq.s32.totalorder %s19, 1
      %p36 = por %p34, %p35
      %p37 = scmp.ne.s32.totalorder %s29, %s32
      %p38 = scmp.eq.s32.totalorder %s19, 0
      %p39 = por %p37, %p38
      %p40 = scmp.ne.s32.totalorder %s29, %s32
      %p41 = scmp.eq.s32.totalorder %s24, 1
      %p42 = por %p40, %p41
      %p43 = scmp.ne.s32.totalorder %s32, %s33
      %p44 = scmp.eq.s32.totalorder %s24, 0
      %p45 = por %p43, %p44
      %p46 = scmp.ne.s32.totalorder %s32, %s33
      %p47 = scmp.eq.s32.totalorder %s25, 1
      %p48 = por %p46, %p47
      %p50 = scmp.ne.s32.totalorder %s33, %s49
      %p51 = scmp.eq.s32.totalorder %s25, 0
      %p52 = por %p50, %p51
      %s54 = sadd.s32 %s53, 1
      %p57 = scmp.eq.s32.totalorder %s19, 1
      %p58 = scmp.ne.s32.totalorder %s53, %s55
      %p59 = scmp.eq.s32.totalorder %s19, 0
      %p60 = por %p58, %p59
      %p61 = scmp.ne.s32.totalorder %s53, %s55
      %p62 = scmp.eq.s32.totalorder %s24, 1
      %p63 = por %p61, %p62
      %p64 = scmp.ne.s32.totalorder %s55, %s56
      %p65 = scmp.eq.s32.totalorder %s24, 0
      %p66 = por %p64, %p65
      %p67 = scmp.ne.s32.totalorder %s55, %s56
      %p68 = scmp.eq.s32.totalorder %s25, 1
      %p69 = por %p67, %p68
      %p71 = scmp.ne.s32.totalorder %s56, %s70
      %p72 = scmp.eq.s32.totalorder %s25, 0
      %p73 = por %p71, %p72
      %s75 = sadd.s32 %s74, 1
      %p78 = scmp.eq.s32.totalorder %s19, 1
      %p79 = scmp.ne.s32.totalorder %s74, %s76
      %p80 = scmp.eq.s32.totalorder %s19, 0
      %p81 = por %p79, %p80
      %p82 = scmp.ne.s32.totalorder %s74, %s76
      %p83 = scmp.eq.s32.totalorder %s24, 1
      %p84 = por %p82, %p83
      %p85 = scmp.ne.s32.totalorder %s76, %s77
      %p86 = scmp.eq.s32.totalorder %s24, 0
      %p87 = por %p85, %p86
      %p88 = scmp.ne.s32.totalorder %s76, %s77
      %p89 = scmp.eq.s32.totalorder %s25, 1
      %p90 = por %p88, %p89
      %p92 = scmp.ne.s32.totalorder %s77, %s91
      %p93 = scmp.eq.s32.totalorder %s25, 0
      %p94 = por %p92, %p93
      %s96 = sadd.s32 %s95, 1
      %p99 = scmp.eq.s32.totalorder %s19, 1
      %p100 = scmp.ne.s32.totalorder %s95, %s97
      %p101 = scmp.eq.s32.totalorder %s19, 0
      %p102 = por %p100, %p101
      %p103 = scmp.ne.s32.totalorder %s95, %s97
      %p104 = scmp.eq.s32.totalorder %s24, 1
      %p105 = por %p103, %p104
      %p106 = scmp.ne.s32.totalorder %s97, %s98
      %p107 = scmp.eq.s32.totalorder %s24, 0
      %p108 = por %p106, %p107
      %p109 = scmp.ne.s32.totalorder %s97, %s98
      %p110 = scmp.eq.s32.totalorder %s25, 1
      %p111 = por %p109, %p110
      %p113 = scmp.ne.s32.totalorder %s98, %s112
      %p114 = scmp.eq.s32.totalorder %s25, 0
      %p115 = por %p113, %p114
      %s117 = sadd.s32 %s116, 1
      %p120 = scmp.eq.s32.totalorder %s19, 1
      %p121 = scmp.ne.s32.totalorder %s116, %s118
      %p122 = scmp.eq.s32.totalorder %s19, 0
      %p123 = por %p121, %p122
      %p124 = scmp.ne.s32.totalorder %s116, %s118
      %p125 = scmp.eq.s32.totalorder %s24, 1
      %p126 = por %p124, %p125
      %p127 = scmp.ne.s32.totalorder %s118, %s119
      %p128 = scmp.eq.s32.totalorder %s24, 0
      %p129 = por %p127, %p128
      %p130 = scmp.ne.s32.totalorder %s118, %s119
      %p131 = scmp.eq.s32.totalorder %s25, 1
      %p132 = por %p130, %p131
      %p134 = scmp.ne.s32.totalorder %s119, %s133
      %p135 = scmp.eq.s32.totalorder %s25, 0
      %p136 = por %p134, %p135
      %s137 = ssub.s32 %s19, %s26
      %p138 = scmp.eq.s32.totalorder %s137, 0
      %s140 = sadd.s32 %s139, 1
      %s141 = scalar_select %p138, %s139, %s140
      %p144 = pneg %p138
      %p145 = scmp.eq.s32.totalorder %s19, 1
      %p146 = por %p144, %p145
      %p147 = scmp.ne.s32.totalorder %s139, %s142
      %p148 = scmp.eq.s32.totalorder %s19, 0
      %p149 = por %p147, %p148
      %p150 = scmp.ne.s32.totalorder %s139, %s142
      %p151 = scmp.eq.s32.totalorder %s24, 1
      %p152 = por %p150, %p151
      %p153 = scmp.ne.s32.totalorder %s142, %s143
      %p154 = scmp.eq.s32.totalorder %s24, 0
      %p155 = por %p153, %p154
      %p156 = scmp.ne.s32.totalorder %s142, %s143
      %p157 = scmp.eq.s32.totalorder %s25, 1
      %p158 = por %p156, %p157
      %p160 = scmp.ne.s32.totalorder %s143, %s159
      %p161 = scmp.eq.s32.totalorder %s25, 0
      %p162 = por %p160, %p161
      %s163 = ssub.s32 %s19, %s26
      %p164 = scmp.eq.s32.totalorder %s163, 0
      %s166 = sadd.s32 %s165, 1
      %s167 = scalar_select %p164, %s165, %s166
      %p170 = pneg %p164
      %p171 = scmp.eq.s32.totalorder %s19, 1
      %p172 = por %p170, %p171
      %p173 = scmp.ne.s32.totalorder %s165, %s168
      %p174 = scmp.eq.s32.totalorder %s19, 0
      %p175 = por %p173, %p174
      %p176 = scmp.ne.s32.totalorder %s165, %s168
      %p177 = scmp.eq.s32.totalorder %s24, 1
      %p178 = por %p176, %p177
      %p179 = scmp.ne.s32.totalorder %s168, %s169
      %p180 = scmp.eq.s32.totalorder %s24, 0
      %p181 = por %p179, %p180
      %p182 = scmp.ne.s32.totalorder %s168, %s169
      %p183 = scmp.eq.s32.totalorder %s25, 1
      %p184 = por %p182, %p183
      %p186 = scmp.ne.s32.totalorder %s169, %s185
      %p187 = scmp.eq.s32.totalorder %s25, 0
      %p188 = por %p186, %p187
      %p189 = scmp.le.s32.totalorder 1, %s19
      %p190 = scmp.lt.s32.totalorder %s19, 3
      %p191 = pnand %p189, %p190
      %p192 = pneg %p191
      // Predicated region
      $region9: #{tpu_custom_call.1} parent=5 // pred_check
        _
      $region10: #{tpu_custom_call.1} parent=5 // pred_check_branch
        %194 = sbr.rel (%p191) target = $region12
      $region11: #{tpu_custom_call.1} parent=5 // pred_region
        %s195 = ssub.s32 %s19, 1
        // Predicated region
        $region13: #{tpu_custom_call.1} parent=11 // pred_check
          %p196 = pneg %p66
        $region14: #{tpu_custom_call.1} parent=11 // pred_check_branch
          %198 = sbr.rel (%p196) target = $region16
        $region15: #{tpu_custom_call.1} parent=11 // pred_region
          %s200 = ssub.s32 256, 256
          %201 = vsyncadd [#allocation6], %s200
          %s202 = sshll.u32 [#allocation5], 4
          %s203 = int_to_ptr.vmem [resolvable:$true] %s202
          %208 = dma.hbm_to_vmem [thread:$0]  %s1, 256, %s203, [#allocation6], 64, 64, 4
        $region16: #{tpu_custom_call.1} parent=11 // pred_fallthru
          _
        // Predicated region
        $region17: #{tpu_custom_call.1} parent=11 // pred_check
          %p209 = pneg %p87
        $region18: #{tpu_custom_call.1} parent=11 // pred_check_branch
          %211 = sbr.rel (%p209) target = $region20
        $region19: #{tpu_custom_call.1} parent=11 // pred_region
          _
        $region20: #{tpu_custom_call.1} parent=11 // pred_fallthru
          _
        // Predicated region
        $region21: #{tpu_custom_call.1} parent=11 // pred_check
          %p212 = pneg %p108
        $region22: #{tpu_custom_call.1} parent=11 // pred_check_branch
          %214 = sbr.rel (%p212) target = $region24
        $region23: #{tpu_custom_call.1} parent=11 // pred_region
          %s216 = ssub.s32 256, 256
          %217 = vsyncadd [#allocation6], %s216
          %s218 = sshll.u32 [#allocation7], 4
          %s219 = int_to_ptr.vmem [resolvable:$true] %s218
          %224 = dma.hbm_to_vmem [thread:$0]  %s3, 256, %s219, [#allocation6], 64, 64, 4
        $region24: #{tpu_custom_call.1} parent=11 // pred_fallthru
          _
        // Predicated region
        $region25: #{tpu_custom_call.1} parent=11 // pred_check
          %p225 = pneg %p129
        $region26: #{tpu_custom_call.1} parent=11 // pred_check_branch
          %227 = sbr.rel (%p225) target = $region28
        $region27: #{tpu_custom_call.1} parent=11 // pred_region
          _
        $region28: #{tpu_custom_call.1} parent=11 // pred_fallthru
          _
      $region12: #{tpu_custom_call.1} parent=5 // pred_fallthru
        _
      %p228 = scmp.lt.s32.totalorder %s19, 2
      // Predicated region
      $region29: #{tpu_custom_call.1} parent=5 // pred_check
        %p229 = pneg %p228
      $region30: #{tpu_custom_call.1} parent=5 // pred_check_branch
        %231 = sbr.rel (%p229) target = $region32
      $region31: #{tpu_custom_call.1} parent=5 // pred_region
        // Predicated region
        $region33: #{tpu_custom_call.1} parent=31 // pred_check
          %p232 = pneg %p39
        $region34: #{tpu_custom_call.1} parent=31 // pred_check_branch
          %234 = sbr.rel (%p232) target = $region36
        $region35: #{tpu_custom_call.1} parent=31 // pred_region
          %s235 = sand.u32 %s29, 1
          %s236 = scalar_lea.sflag [#allocation3], %s235
          %s237 = sand.u32 %s29, 1
          %s238 = smul.addr %s237, 4
          %s239 = scalar_lea.vmem [#allocation2], %s238
          %s241 = ssub.s32 64, 64
          %242 = vsyncadd %s236, %s241
          %s243 = smul.addr %s19, 64
          %s244 = scalar_lea.hbm %s0, %s243
          %s246 = sshll.u32 %s239, 4
          %s247 = int_to_ptr.vmem [resolvable:$true] %s246
          %249 = dma.hbm_to_vmem [thread:$0]  %s244, 64, %s247, %s236
        $region36: #{tpu_custom_call.1} parent=31 // pred_fallthru
          _
        // Predicated region
        $region37: #{tpu_custom_call.1} parent=31 // pred_check
          %p250 = pneg %p149
        $region38: #{tpu_custom_call.1} parent=31 // pred_check_branch
          %252 = sbr.rel (%p250) target = $region40
        $region39: #{tpu_custom_call.1} parent=31 // pred_region
          %p253 = scmp.lt.s32.totalorder %s19, 1
          %s254 = scalar_select %p253, %s19, 1
          %s255 = scalar_lea.vmem %s5, %s254
        $region40: #{tpu_custom_call.1} parent=31 // pred_fallthru
          _
      $region32: #{tpu_custom_call.1} parent=5 // pred_fallthru
        _
      %p256 = scmp.le.s32.totalorder 1, %s19
      %p257 = scmp.lt.s32.totalorder %s19, 3
      %p258 = pnand %p256, %p257
      %p259 = pneg %p258
      // Predicated region
      $region41: #{tpu_custom_call.1} parent=5 // pred_check
        _
      $region42: #{tpu_custom_call.1} parent=5 // pred_check_branch
        %261 = sbr.rel (%p258) target = $region44
      $region43: #{tpu_custom_call.1} parent=5 // pred_region
        %s262 = ssub.s32 %s19, 1
        %s263 = sand.u32 %s32, 1
        %s264 = scalar_lea.sflag [#allocation3], %s263
        %s265 = sand.u32 %s32, 1
        %s266 = smul.addr %s265, 4
        %s267 = scalar_lea.vmem [#allocation2], %s266
        // Predicated region
        $region45: #{tpu_custom_call.1} parent=43 // pred_check
          %p268 = pneg %p45
        $region46: #{tpu_custom_call.1} parent=43 // pred_check_branch
          %270 = sbr.rel (%p268) target = $region48
        $region47: #{tpu_custom_call.1} parent=43 // pred_region
          %271 = dma.done %s264, 64
        $region48: #{tpu_custom_call.1} parent=43 // pred_fallthru
          _
        // Predicated region
        $region49: #{tpu_custom_call.1} parent=43 // pred_check
          %p272 = pneg %p66
        $region50: #{tpu_custom_call.1} parent=43 // pred_check_branch
          %274 = sbr.rel (%p272) target = $region52
        $region51: #{tpu_custom_call.1} parent=43 // pred_region
          %275 = dma.done [#allocation6], 256
        $region52: #{tpu_custom_call.1} parent=43 // pred_fallthru
          _
        // Predicated region
        $region53: #{tpu_custom_call.1} parent=43 // pred_check
          %p276 = pneg %p108
        $region54: #{tpu_custom_call.1} parent=43 // pred_check_branch
          %278 = sbr.rel (%p276) target = $region56
        $region55: #{tpu_custom_call.1} parent=43 // pred_region
          %279 = dma.done [#allocation6], 256
        $region56: #{tpu_custom_call.1} parent=43 // pred_fallthru
          _
        %s280 = sand.u32 %s32, 1
        %s281 = scalar_lea.sflag [#allocation3], %s280
        %s282 = sand.u32 %s32, 1
        %s283 = smul.addr %s282, 4
        %s284 = scalar_lea.vmem [#allocation2], %s283
        %p285 = pneg %p45
        %p286 = pneg %p42
        %p287 = pneg %p66
        %p288 = pneg %p63
        %p289 = pneg %p87
        %p290 = pneg %p84
        %p291 = pneg %p108
        %p292 = pneg %p105
        %p293 = pneg %p129
        %p294 = pneg %p126
        %p295 = scmp.lt.s32.totalorder %s24, 1
        %s296 = scalar_select %p295, %s24, 1
        %s297 = scalar_lea.vmem %s5, %s296
        %p298 = pneg %p155
        %p299 = pneg %p152
        %p300 = pneg %p181
        %p301 = pneg %p178
        %s302 = sand.u32 %s168, 1
        %s303 = scalar_lea.sflag [#allocation4], %s302
        %s304 = sand.u32 %s168, 1
        %s305 = smul.addr %s304, 8
        %s306 = scalar_lea.vmem [#allocation8], %s305
        %p307 = scmp.lt.s32.totalorder %s24, 1
        %s308 = scalar_select %p307, %s24, 1
        %s309 = scalar_lea.vmem %s5, %s308
        %v311 = vld [vmem:[%s267] sm:$0xf]
        %v312 = vld [vmem:[#allocation5] sm:$0xf]
        %v313 = vld [vmem:[#allocation5 + $0x4] sm:$0xf]
        %v314 = vld [vmem:[#allocation5 + $0x8] sm:$0xf]
        %v315 = vld [vmem:[#allocation5 + $0xc] sm:$0xf]
        %v316 = vld [vmem:[%s2] sm:$0x1]
        %v318 = vlaneseq
        %v319 = vshrl.u32 %v318, 7
        %v320 = vsub.s32 0, %v319
        %v321 = vrot.slane %v316, %v320
        %v327 = vunpack.c.l.b16 %v312
        %v328 = vunpack.c.l.b16 %v313
        %v329 = vunpack.c.l.b16 %v314
        %v330 = vunpack.c.l.b16 %v315
        %v331 = vpack.c.b16 %v328, %v327
        %v332 = vpack.c.b16 %v330, %v329
        %vm335 = vcmask 261120
        %v337 = vsel %vm335, %v311, 0
        %339 = vmatprep.subr.bf16.mxu0 0
        %340 = vmatpush1.bf16.msra.mxu0 0
        %341 = vmatprep.subr.bf16.mxu0 0
        %342 = vmatpush1.bf16.msra.mxu0 0
        %343 = vmatprep.subr.bf16.mxu0 0
        %344 = vmatpush1.bf16.msra.mxu0 0
        %345 = vmatprep.subr.bf16.mxu0 0
        %346 = vmatpush1.bf16.msra.mxu0 0
        %347 = vmatprep.subr.bf16.mxu0 0
        %348 = vmatpush1.bf16.msra.mxu0 0
        %349 = vmatprep.subr.bf16.mxu0 0
        %350 = vmatpush1.bf16.msra.mxu0 0
        %351 = vmatprep.subr.bf16.mxu0 0
        %352 = vmatpush1.bf16.msra.mxu0 %v332
        %353 = vmatprep.subr.bf16.mxu0 0
        %354 = vmatpush1.bf16.msra.mxu0 %v331
        %355 = vmatprep.subr.bf16.mxu0 0
        %356 = vmatpush2.bf16.msra.mxu0 0
        %357 = vmatprep.subr.bf16.mxu0 0
        %358 = vmatpush2.bf16.msra.mxu0 0
        %359 = vmatprep.subr.bf16.mxu0 0
        %360 = vmatpush2.bf16.msra.mxu0 0
        %361 = vmatprep.subr.bf16.mxu0 0
        %362 = vmatpush2.bf16.msra.mxu0 0
        %363 = vmatprep.subr.bf16.mxu0 0
        %364 = vmatpush2.bf16.msra.mxu0 0
        %365 = vmatprep.subr.bf16.mxu0 0
        %366 = vmatpush2.bf16.msra.mxu0 0
        %367 = vmatprep.subr.bf16.mxu0 0
        %368 = vmatpush2.bf16.msra.mxu0 0
        %369 = vmatprep.subr.bf16.mxu0 0
        %370 = vmatpush2.bf16.msra.mxu0 0
        %371 = vmatprep.mubr.bf16.mxu0 0
        %372 = vmatmul.mubr.bf16.gmra.mxu0 %v337
        %v373 = vpop.f32.mrf.mxu0
        %v374 = vadd.f32 %v321, %v373
        %v375 = vpop.f32.mrf.mxu0
        %v376 = vpop.f32.mrf.mxu0
        %v377 = vpop.f32.mrf.mxu0
        %378 = vdwg.mxu0
        %v379 = vpack.c.bf16 %v374, %v374
        %381 = vrot.lane.b32.xlu0 %v379, 120
        %v382 = vpop.permute.xlu0 %381
        %384 = vrot.lane.b32.xlu0 %v379, 112
        %v385 = vpop.permute.xlu0 %384
        %387 = vrot.lane.b32.xlu0 %v379, 104
        %v388 = vpop.permute.xlu0 %387
        %390 = vrot.lane.b32.xlu0 %v379, 96
        %v391 = vpop.permute.xlu0 %390
        %393 = vrot.lane.b32.xlu0 %v379, 88
        %v394 = vpop.permute.xlu0 %393
        %396 = vrot.lane.b32.xlu0 %v379, 80
        %v397 = vpop.permute.xlu0 %396
        %399 = vrot.lane.b32.xlu0 %v379, 72
        %v400 = vpop.permute.xlu0 %399
        %402 = vrot.lane.b32.xlu0 %v379, 64
        %v403 = vpop.permute.xlu0 %402
        %404 = vrot.lane.b32.xlu0 %v379, 56
        %v405 = vpop.permute.xlu0 %404
        %406 = vrot.lane.b32.xlu0 %v379, 48
        %v407 = vpop.permute.xlu0 %406
        %408 = vrot.lane.b32.xlu0 %v379, 40
        %v409 = vpop.permute.xlu0 %408
        %v410 = vcombine.low %v379, %v391
        %v412 = vunpack.c.l.s4 1983009808
        %v413 = vunpack.c.0.s8 %v412
        %v414 = vlaneseq
        %v415 = vshrl.u32 %v414, 7
        %v416 = vsub.s32 %v413, %v415
        %v417 = vrot.slane %v410, %v416
        %v418 = vcombine.low %v385, %v397
        %v420 = vunpack.c.l.s4 1983009808
        %v421 = vunpack.c.0.s8 %v420
        %v422 = vlaneseq
        %v423 = vshrl.u32 %v422, 7
        %v424 = vsub.s32 %v421, %v423
        %v425 = vrot.slane %v418, %v424
        %v428 = vunpack.c.l.s4 1983009808
        %v429 = vunpack.c.0.s8 %v428
        %v430 = vlaneseq
        %v431 = vshrl.u32 %v430, 7
        %v432 = vsub.s32 %v429, %v431
        %v433 = vrot.slane %v403, %v432
        %v436 = vunpack.c.l.s4 1983009808
        %v437 = vunpack.c.0.s8 %v436
        %v438 = vlaneseq
        %v439 = vshrl.u32 %v438, 7
        %v440 = vsub.s32 %v437, %v439
        %v441 = vrot.slane %v407, %v440
        %v442 = vcombine.low %v417, %v425
        %v443 = vcombine.high %v417, %v425
        %v445 = vunpack.c.l.s4 1934713408
        %v446 = vunpack.c.0.s8 %v445
        %v447 = vlaneseq
        %v448 = vshrl.u32 %v447, 7
        %v449 = vsub.s32 %v446, %v448
        %v450 = vrot.slane %v442, %v449
        %v452 = vunpack.c.l.s4 1934713408
        %v453 = vunpack.c.0.s8 %v452
        %v454 = vlaneseq
        %v455 = vshrl.u32 %v454, 7
        %v456 = vsub.s32 %v453, %v455
        %v457 = vrot.slane %v443, %v456
        %v458 = vcombine.low %v433, %v441
        %v459 = vcombine.high %v433, %v441
        %v461 = vunpack.c.l.s4 1934713408
        %v462 = vunpack.c.0.s8 %v461
        %v463 = vlaneseq
        %v464 = vshrl.u32 %v463, 7
        %v465 = vsub.s32 %v462, %v464
        %v466 = vrot.slane %v458, %v465
        %v468 = vunpack.c.l.s4 1934713408
        %v469 = vunpack.c.0.s8 %v468
        %v470 = vlaneseq
        %v471 = vshrl.u32 %v470, 7
        %v472 = vsub.s32 %v469, %v471
        %v473 = vrot.slane %v459, %v472
        %v474 = vcombine.low %v450, %v466
        %v475 = vcombine.high %v450, %v466
        %v476 = vcombine.low %v457, %v473
        %v477 = vcombine.high %v457, %v473
        %v478 = vcombine.low %v382, %v394
        %v480 = vunpack.c.l.s4 1983009808
        %v481 = vunpack.c.0.s8 %v480
        %v482 = vlaneseq
        %v483 = vshrl.u32 %v482, 7
        %v484 = vsub.s32 %v481, %v483
        %v485 = vrot.slane %v478, %v484
        %v486 = vcombine.low %v388, %v400
        %v488 = vunpack.c.l.s4 1983009808
        %v489 = vunpack.c.0.s8 %v488
        %v490 = vlaneseq
        %v491 = vshrl.u32 %v490, 7
        %v492 = vsub.s32 %v489, %v491
        %v493 = vrot.slane %v486, %v492
        %v496 = vunpack.c.l.s4 1983009808
        %v497 = vunpack.c.0.s8 %v496
        %v498 = vlaneseq
        %v499 = vshrl.u32 %v498, 7
        %v500 = vsub.s32 %v497, %v499
        %v501 = vrot.slane %v405, %v500
        %v504 = vunpack.c.l.s4 1983009808
        %v505 = vunpack.c.0.s8 %v504
        %v506 = vlaneseq
        %v507 = vshrl.u32 %v506, 7
        %v508 = vsub.s32 %v505, %v507
        %v509 = vrot.slane %v409, %v508
        %v510 = vcombine.low %v485, %v493
        %v511 = vcombine.high %v485, %v493
        %v513 = vunpack.c.l.s4 1934713408
        %v514 = vunpack.c.0.s8 %v513
        %v515 = vlaneseq
        %v516 = vshrl.u32 %v515, 7
        %v517 = vsub.s32 %v514, %v516
        %v518 = vrot.slane %v510, %v517
        %v520 = vunpack.c.l.s4 1934713408
        %v521 = vunpack.c.0.s8 %v520
        %v522 = vlaneseq
        %v523 = vshrl.u32 %v522, 7
        %v524 = vsub.s32 %v521, %v523
        %v525 = vrot.slane %v511, %v524
        %v526 = vcombine.low %v501, %v509
        %v527 = vcombine.high %v501, %v509
        %v529 = vunpack.c.l.s4 1934713408
        %v530 = vunpack.c.0.s8 %v529
        %v531 = vlaneseq
        %v532 = vshrl.u32 %v531, 7
        %v533 = vsub.s32 %v530, %v532
        %v534 = vrot.slane %v526, %v533
        %v536 = vunpack.c.l.s4 1934713408
        %v537 = vunpack.c.0.s8 %v536
        %v538 = vlaneseq
        %v539 = vshrl.u32 %v538, 7
        %v540 = vsub.s32 %v537, %v539
        %v541 = vrot.slane %v527, %v540
        %v542 = vcombine.low %v518, %v534
        %v543 = vcombine.high %v518, %v534
        %v544 = vcombine.low %v525, %v541
        %v545 = vcombine.high %v525, %v541
        %v548 = vpack.i.b16 %v542, %v474
        %v550 = vshrl.u32 %v474, 16
        %v551 = vshrl.u32 %v542, 16
        %v552 = vpack.i.b16 %v551, %v550
        %v556 = vpack.i.b16 %v543, %v475
        %v558 = vshrl.u32 %v475, 16
        %v559 = vshrl.u32 %v543, 16
        %v560 = vpack.i.b16 %v559, %v558
        %v564 = vpack.i.b16 %v544, %v476
        %v566 = vshrl.u32 %v476, 16
        %v567 = vshrl.u32 %v544, 16
        %v568 = vpack.i.b16 %v567, %v566
        %v572 = vpack.i.b16 %v545, %v477
        %v574 = vshrl.u32 %v477, 16
        %v575 = vshrl.u32 %v545, 16
        %v576 = vpack.i.b16 %v575, %v574
        %v578 = vcombine.low %v548, %v564
        %v579 = vcombine.high %v548, %v564
        %v581 = vunpack.c.l.s4 1983009808
        %v582 = vunpack.c.0.s8 %v581
        %v583 = vlaneseq
        %v584 = vshrl.u32 %v583, 7
        %v585 = vsub.s32 %v582, %v584
        %v586 = vrot.slane %v578, %v585
        %v588 = vunpack.c.l.s4 1983009808
        %v589 = vunpack.c.0.s8 %v588
        %v590 = vlaneseq
        %v591 = vshrl.u32 %v590, 7
        %v592 = vsub.s32 %v589, %v591
        %v593 = vrot.slane %v579, %v592
        %v594 = vcombine.low %v556, %v572
        %v595 = vcombine.high %v556, %v572
        %v597 = vunpack.c.l.s4 1983009808
        %v598 = vunpack.c.0.s8 %v597
        %v599 = vlaneseq
        %v600 = vshrl.u32 %v599, 7
        %v601 = vsub.s32 %v598, %v600
        %v602 = vrot.slane %v594, %v601
        %v604 = vunpack.c.l.s4 1983009808
        %v605 = vunpack.c.0.s8 %v604
        %v606 = vlaneseq
        %v607 = vshrl.u32 %v606, 7
        %v608 = vsub.s32 %v605, %v607
        %v609 = vrot.slane %v595, %v608
        %v610 = vcombine.low %v586, %v602
        %v611 = vcombine.high %v586, %v602
        %v613 = vunpack.c.l.s4 1934713408
        %v614 = vunpack.c.0.s8 %v613
        %v615 = vlaneseq
        %v616 = vshrl.u32 %v615, 7
        %v617 = vsub.s32 %v614, %v616
        %v618 = vrot.slane %v610, %v617
        %v620 = vunpack.c.l.s4 1934713408
        %v621 = vunpack.c.0.s8 %v620
        %v622 = vlaneseq
        %v623 = vshrl.u32 %v622, 7
        %v624 = vsub.s32 %v621, %v623
        %v625 = vrot.slane %v611, %v624
        %v626 = vcombine.low %v593, %v609
        %v628 = vunpack.c.l.s4 1934713408
        %v629 = vunpack.c.0.s8 %v628
        %v630 = vlaneseq
        %v631 = vshrl.u32 %v630, 7
        %v632 = vsub.s32 %v629, %v631
        %v633 = vrot.slane %v626, %v632
        %v634 = vcombine.high %v618, 0
        %v635 = vcombine.high %v625, 0
        %v636 = vcombine.high %v633, 0
        %v637 = vcombine.low %v552, %v568
        %v638 = vcombine.high %v552, %v568
        %v640 = vunpack.c.l.s4 1983009808
        %v641 = vunpack.c.0.s8 %v640
        %v642 = vlaneseq
        %v643 = vshrl.u32 %v642, 7
        %v644 = vsub.s32 %v641, %v643
        %v645 = vrot.slane %v637, %v644
        %v647 = vunpack.c.l.s4 1983009808
        %v648 = vunpack.c.0.s8 %v647
        %v649 = vlaneseq
        %v650 = vshrl.u32 %v649, 7
        %v651 = vsub.s32 %v648, %v650
        %v652 = vrot.slane %v638, %v651
        %v653 = vcombine.low %v560, %v576
        %v654 = vcombine.high %v560, %v576
        %v656 = vunpack.c.l.s4 1983009808
        %v657 = vunpack.c.0.s8 %v656
        %v658 = vlaneseq
        %v659 = vshrl.u32 %v658, 7
        %v660 = vsub.s32 %v657, %v659
        %v661 = vrot.slane %v653, %v660
        %v663 = vunpack.c.l.s4 1983009808
        %v664 = vunpack.c.0.s8 %v663
        %v665 = vlaneseq
        %v666 = vshrl.u32 %v665, 7
        %v667 = vsub.s32 %v664, %v666
        %v668 = vrot.slane %v654, %v667
        %v669 = vcombine.low %v645, %v661
        %v670 = vcombine.high %v645, %v661
        %v672 = vunpack.c.l.s4 1934713408
        %v673 = vunpack.c.0.s8 %v672
        %v674 = vlaneseq
        %v675 = vshrl.u32 %v674, 7
        %v676 = vsub.s32 %v673, %v675
        %v677 = vrot.slane %v669, %v676
        %v679 = vunpack.c.l.s4 1934713408
        %v680 = vunpack.c.0.s8 %v679
        %v681 = vlaneseq
        %v682 = vshrl.u32 %v681, 7
        %v683 = vsub.s32 %v680, %v682
        %v684 = vrot.slane %v670, %v683
        %v685 = vcombine.low %v652, %v668
        %v687 = vunpack.c.l.s4 1934713408
        %v688 = vunpack.c.0.s8 %v687
        %v689 = vlaneseq
        %v690 = vshrl.u32 %v689, 7
        %v691 = vsub.s32 %v688, %v690
        %v692 = vrot.slane %v685, %v691
        %v693 = vcombine.high %v677, 0
        %v694 = vcombine.high %v684, 0
        %v695 = vcombine.high %v692, 0
        %v698 = vpack.i.b16 %v677, %v618
        %v699 = vshrl.u32 %v618, 16
        %v700 = vshrl.u32 %v677, 16
        %v701 = vpack.i.b16 %v700, %v699
        %v704 = vpack.i.b16 %v693, %v634
        %v705 = vshrl.u32 %v634, 16
        %v706 = vshrl.u32 %v693, 16
        %v707 = vpack.i.b16 %v706, %v705
        %v710 = vpack.i.b16 %v684, %v625
        %v711 = vshrl.u32 %v625, 16
        %v712 = vshrl.u32 %v684, 16
        %v713 = vpack.i.b16 %v712, %v711
        %v716 = vpack.i.b16 %v694, %v635
        %v717 = vshrl.u32 %v635, 16
        %v718 = vshrl.u32 %v694, 16
        %v719 = vpack.i.b16 %v718, %v717
        %v722 = vpack.i.b16 %v692, %v633
        %v723 = vshrl.u32 %v633, 16
        %v724 = vshrl.u32 %v692, 16
        %v725 = vpack.i.b16 %v724, %v723
        %v728 = vpack.i.b16 %v695, %v636
        %v729 = vshrl.u32 %v636, 16
        %v730 = vshrl.u32 %v695, 16
        %v731 = vpack.i.b16 %v730, %v729
        %v732 = vld [vmem:[%s309] sm:$0x1]
        %v733 = vsub.f32 %v732, 1.0
        %v734 = vmul.f32 %v733, 1e+09
        %v736 = vlaneseq
        %v737 = vshrl.u32 %v736, 7
        %v738 = vsub.s32 0, %v737
        %v739 = vrot.slane %v734, %v738
        %vm741 = vcmask 64512
        %v743 = vsel %vm741, %v698, 0
        %v746 = vsel %vm741, %v710, 0
        %748 = vmatprep.subr.bf16.mxu0 0
        %749 = vmatpush1.bf16.xpose.msra.mxu0 0
        %750 = vmatprep.subr.bf16.mxu0 0
        %751 = vmatpush1.bf16.xpose.msra.mxu0 0
        %752 = vmatprep.subr.bf16.mxu0 0
        %753 = vmatpush1.bf16.xpose.msra.mxu0 0
        %754 = vmatprep.subr.bf16.mxu0 0
        %755 = vmatpush1.bf16.xpose.msra.mxu0 0
        %756 = vmatprep.subr.bf16.mxu0 0
        %757 = vmatpush1.bf16.xpose.msra.mxu0 0
        %758 = vmatprep.subr.bf16.mxu0 0
        %759 = vmatpush1.bf16.xpose.msra.mxu0 0
        %760 = vmatprep.subr.bf16.mxu0 0
        %761 = vmatpush1.bf16.xpose.msra.mxu0 0
        %762 = vmatprep.subr.bf16.mxu0 0
        %763 = vmatpush1.bf16.xpose.msra.mxu0 %v746
        %764 = vmatprep.subr.bf16.mxu0 0
        %765 = vmatpush2.bf16.xpose.msra.mxu0 0
        %766 = vmatprep.subr.bf16.mxu0 0
        %767 = vmatpush2.bf16.xpose.msra.mxu0 0
        %768 = vmatprep.subr.bf16.mxu0 0
        %769 = vmatpush2.bf16.xpose.msra.mxu0 0
        %770 = vmatprep.subr.bf16.mxu0 0
        %771 = vmatpush2.bf16.xpose.msra.mxu0 0
        %772 = vmatprep.subr.bf16.mxu0 0
        %773 = vmatpush2.bf16.xpose.msra.mxu0 0
        %774 = vmatprep.subr.bf16.mxu0 0
        %775 = vmatpush2.bf16.xpose.msra.mxu0 0
        %776 = vmatprep.subr.bf16.mxu0 0
        %777 = vmatpush2.bf16.xpose.msra.mxu0 0
        %778 = vmatprep.subr.bf16.mxu0 0
        %779 = vmatpush2.bf16.xpose.msra.mxu0 0
        %780 = vmatprep.mubr.bf16.mxu0 0
        %781 = vmatmul.mubr.bf16.gmra.mxu0 %v743
        %v782 = vpop.f32.mrf.mxu0
        %v783 = vadd.f32 %v739, %v782
        %v784 = vpop.f32.mrf.mxu0
        %v785 = vpop.f32.mrf.mxu0
        %v786 = vpop.f32.mrf.mxu0
        %787 = vdwg.mxu0
        %v789 = vsel %vm741, %v701, 0
        %v792 = vsel %vm741, %v713, 0
        %794 = vmatprep.subr.bf16.mxu0 0
        %795 = vmatpush1.bf16.xpose.msra.mxu0 0
        %796 = vmatprep.subr.bf16.mxu0 0
        %797 = vmatpush1.bf16.xpose.msra.mxu0 0
        %798 = vmatprep.subr.bf16.mxu0 0
        %799 = vmatpush1.bf16.xpose.msra.mxu0 0
        %800 = vmatprep.subr.bf16.mxu0 0
        %801 = vmatpush1.bf16.xpose.msra.mxu0 0
        %802 = vmatprep.subr.bf16.mxu0 0
        %803 = vmatpush1.bf16.xpose.msra.mxu0 0
        %804 = vmatprep.subr.bf16.mxu0 0
        %805 = vmatpush1.bf16.xpose.msra.mxu0 0
        %806 = vmatprep.subr.bf16.mxu0 0
        %807 = vmatpush1.bf16.xpose.msra.mxu0 0
        %808 = vmatprep.subr.bf16.mxu0 0
        %809 = vmatpush1.bf16.xpose.msra.mxu0 %v792
        %810 = vmatprep.subr.bf16.mxu0 0
        %811 = vmatpush2.bf16.xpose.msra.mxu0 0
        %812 = vmatprep.subr.bf16.mxu0 0
        %813 = vmatpush2.bf16.xpose.msra.mxu0 0
        %814 = vmatprep.subr.bf16.mxu0 0
        %815 = vmatpush2.bf16.xpose.msra.mxu0 0
        %816 = vmatprep.subr.bf16.mxu0 0
        %817 = vmatpush2.bf16.xpose.msra.mxu0 0
        %818 = vmatprep.subr.bf16.mxu0 0
        %819 = vmatpush2.bf16.xpose.msra.mxu0 0
        %820 = vmatprep.subr.bf16.mxu0 0
        %821 = vmatpush2.bf16.xpose.msra.mxu0 0
        %822 = vmatprep.subr.bf16.mxu0 0
        %823 = vmatpush2.bf16.xpose.msra.mxu0 0
        %824 = vmatprep.subr.bf16.mxu0 0
        %825 = vmatpush2.bf16.xpose.msra.mxu0 0
        %826 = vmatprep.mubr.bf16.mxu0 0
        %827 = vmatmul.mubr.bf16.gmra.mxu0 %v789
        %v828 = vpop.f32.mrf.mxu0
        %v829 = vadd.f32 %v739, %v828
        %v830 = vpop.f32.mrf.mxu0
        %v831 = vpop.f32.mrf.mxu0
        %v832 = vpop.f32.mrf.mxu0
        %833 = vdwg.mxu0
        %v835 = vsel %vm741, %v704, 0
        %v838 = vsel %vm741, %v716, 0
        %840 = vmatprep.subr.bf16.mxu0 0
        %841 = vmatpush1.bf16.xpose.msra.mxu0 0
        %842 = vmatprep.subr.bf16.mxu0 0
        %843 = vmatpush1.bf16.xpose.msra.mxu0 0
        %844 = vmatprep.subr.bf16.mxu0 0
        %845 = vmatpush1.bf16.xpose.msra.mxu0 0
        %846 = vmatprep.subr.bf16.mxu0 0
        %847 = vmatpush1.bf16.xpose.msra.mxu0 0
        %848 = vmatprep.subr.bf16.mxu0 0
        %849 = vmatpush1.bf16.xpose.msra.mxu0 0
        %850 = vmatprep.subr.bf16.mxu0 0
        %851 = vmatpush1.bf16.xpose.msra.mxu0 0
        %852 = vmatprep.subr.bf16.mxu0 0
        %853 = vmatpush1.bf16.xpose.msra.mxu0 0
        %854 = vmatprep.subr.bf16.mxu0 0
        %855 = vmatpush1.bf16.xpose.msra.mxu0 %v838
        %856 = vmatprep.subr.bf16.mxu0 0
        %857 = vmatpush2.bf16.xpose.msra.mxu0 0
        %858 = vmatprep.subr.bf16.mxu0 0
        %859 = vmatpush2.bf16.xpose.msra.mxu0 0
        %860 = vmatprep.subr.bf16.mxu0 0
        %861 = vmatpush2.bf16.xpose.msra.mxu0 0
        %862 = vmatprep.subr.bf16.mxu0 0
        %863 = vmatpush2.bf16.xpose.msra.mxu0 0
        %864 = vmatprep.subr.bf16.mxu0 0
        %865 = vmatpush2.bf16.xpose.msra.mxu0 0
        %866 = vmatprep.subr.bf16.mxu0 0
        %867 = vmatpush2.bf16.xpose.msra.mxu0 0
        %868 = vmatprep.subr.bf16.mxu0 0
        %869 = vmatpush2.bf16.xpose.msra.mxu0 0
        %870 = vmatprep.subr.bf16.mxu0 0
        %871 = vmatpush2.bf16.xpose.msra.mxu0 0
        %872 = vmatprep.mubr.bf16.mxu0 0
        %873 = vmatmul.mubr.bf16.gmra.mxu0 %v835
        %v874 = vpop.f32.mrf.mxu0
        %v875 = vadd.f32 %v739, %v874
        %v876 = vpop.f32.mrf.mxu0
        %v877 = vpop.f32.mrf.mxu0
        %v878 = vpop.f32.mrf.mxu0
        %879 = vdwg.mxu0
        %v881 = vsel %vm741, %v707, 0
        %v884 = vsel %vm741, %v719, 0
        %886 = vmatprep.subr.bf16.mxu0 0
        %887 = vmatpush1.bf16.xpose.msra.mxu0 0
        %888 = vmatprep.subr.bf16.mxu0 0
        %889 = vmatpush1.bf16.xpose.msra.mxu0 0
        %890 = vmatprep.subr.bf16.mxu0 0
        %891 = vmatpush1.bf16.xpose.msra.mxu0 0
        %892 = vmatprep.subr.bf16.mxu0 0
        %893 = vmatpush1.bf16.xpose.msra.mxu0 0
        %894 = vmatprep.subr.bf16.mxu0 0
        %895 = vmatpush1.bf16.xpose.msra.mxu0 0
        %896 = vmatprep.subr.bf16.mxu0 0
        %897 = vmatpush1.bf16.xpose.msra.mxu0 0
        %898 = vmatprep.subr.bf16.mxu0 0
        %899 = vmatpush1.bf16.xpose.msra.mxu0 0
        %900 = vmatprep.subr.bf16.mxu0 0
        %901 = vmatpush1.bf16.xpose.msra.mxu0 %v884
        %902 = vmatprep.subr.bf16.mxu0 0
        %903 = vmatpush2.bf16.xpose.msra.mxu0 0
        %904 = vmatprep.subr.bf16.mxu0 0
        %905 = vmatpush2.bf16.xpose.msra.mxu0 0
        %906 = vmatprep.subr.bf16.mxu0 0
        %907 = vmatpush2.bf16.xpose.msra.mxu0 0
        %908 = vmatprep.subr.bf16.mxu0 0
        %909 = vmatpush2.bf16.xpose.msra.mxu0 0
        %910 = vmatprep.subr.bf16.mxu0 0
        %911 = vmatpush2.bf16.xpose.msra.mxu0 0
        %912 = vmatprep.subr.bf16.mxu0 0
        %913 = vmatpush2.bf16.xpose.msra.mxu0 0
        %914 = vmatprep.subr.bf16.mxu0 0
        %915 = vmatpush2.bf16.xpose.msra.mxu0 0
        %916 = vmatprep.subr.bf16.mxu0 0
        %917 = vmatpush2.bf16.xpose.msra.mxu0 0
        %918 = vmatprep.mubr.bf16.mxu0 0
        %919 = vmatmul.mubr.bf16.gmra.mxu0 %v881
        %v920 = vpop.f32.mrf.mxu0
        %v921 = vadd.f32 %v739, %v920
        %v922 = vpop.f32.mrf.mxu0
        %v923 = vpop.f32.mrf.mxu0
        %v924 = vpop.f32.mrf.mxu0
        %925 = vdwg.mxu0
        %v926 = vsel %vm741, %v783, -inf
        %927 = vmax.xlane.f32.xlu0 %v926
        %v928 = vpop.xlane.xlu0 %927
        %v929 = vsel %vm741, %v829, -inf
        %930 = vmax.xlane.f32.xlu0 %v929
        %v931 = vpop.xlane.xlu0 %930
        %v932 = vsel %vm741, %v875, -inf
        %933 = vmax.xlane.f32.xlu0 %v932
        %v934 = vpop.xlane.xlu0 %933
        %v935 = vsel %vm741, %v921, -inf
        %936 = vmax.xlane.f32.xlu0 %v935
        %v937 = vpop.xlane.xlu0 %936
        %v938 = vsub.f32 %v783, %v928
        %v939 = vsub.f32 %v829, %v931
        %v940 = vsub.f32 %v875, %v934
        %v941 = vsub.f32 %v921, %v937
        %v942 = vmul.f32 %v938, 1.442695
        %v943 = vpow.pop %v942
        %v944 = vmul.f32 %v939, 1.442695
        %v945 = vpow.pop %v944
        %v946 = vmul.f32 %v940, 1.442695
        %v947 = vpow.pop %v946
        %v948 = vmul.f32 %v941, 1.442695
        %v949 = vpow.pop %v948
        %v950 = vsel %vm741, %v943, 0.0
        %951 = vadd.xlane.f32.xlu0 %v950
        %v952 = vpop.xlane.xlu0 %951
        %v953 = vsel %vm741, %v945, 0.0
        %954 = vadd.xlane.f32.xlu0 %v953
        %v955 = vpop.xlane.xlu0 %954
        %v956 = vsel %vm741, %v947, 0.0
        %957 = vadd.xlane.f32.xlu0 %v956
        %v958 = vpop.xlane.xlu0 %957
        %v959 = vsel %vm741, %v949, 0.0
        %960 = vadd.xlane.f32.xlu0 %v959
        %v961 = vpop.xlane.xlu0 %960
        %v962 = vpack.c.bf16 %v943, %v943
        %v963 = vpack.c.bf16 %v945, %v945
        %v964 = vpack.c.bf16 %v947, %v947
        %v965 = vpack.c.bf16 %v949, %v949
        %v967 = vsel %vm741, %v962, 0
        %vm969 = vcmask 1043456
        %v971 = vsel %vm969, %v722, 0
        %973 = vmatprep.subr.bf16.mxu0 0
        %974 = vmatpush1.bf16.msra.mxu0 0
        %975 = vmatprep.subr.bf16.mxu0 0
        %976 = vmatpush1.bf16.msra.mxu0 0
        %977 = vmatprep.subr.bf16.mxu0 0
        %978 = vmatpush1.bf16.msra.mxu0 0
        %979 = vmatprep.subr.bf16.mxu0 0
        %980 = vmatpush1.bf16.msra.mxu0 0
        %981 = vmatprep.subr.bf16.mxu0 0
        %982 = vmatpush1.bf16.msra.mxu0 0
        %983 = vmatprep.subr.bf16.mxu0 0
        %984 = vmatpush1.bf16.msra.mxu0 0
        %985 = vmatprep.subr.bf16.mxu0 0
        %986 = vmatpush1.bf16.msra.mxu0 0
        %987 = vmatprep.subr.bf16.mxu0 0
        %988 = vmatpush1.bf16.msra.mxu0 %v971
        %989 = vmatprep.subr.bf16.mxu0 0
        %990 = vmatpush2.bf16.msra.mxu0 0
        %991 = vmatprep.subr.bf16.mxu0 0
        %992 = vmatpush2.bf16.msra.mxu0 0
        %993 = vmatprep.subr.bf16.mxu0 0
        %994 = vmatpush2.bf16.msra.mxu0 0
        %995 = vmatprep.subr.bf16.mxu0 0
        %996 = vmatpush2.bf16.msra.mxu0 0
        %997 = vmatprep.subr.bf16.mxu0 0
        %998 = vmatpush2.bf16.msra.mxu0 0
        %999 = vmatprep.subr.bf16.mxu0 0
        %1000 = vmatpush2.bf16.msra.mxu0 0
        %1001 = vmatprep.subr.bf16.mxu0 0
        %1002 = vmatpush2.bf16.msra.mxu0 0
        %1003 = vmatprep.subr.bf16.mxu0 0
        %1004 = vmatpush2.bf16.msra.mxu0 0
        %1005 = vmatprep.mubr.bf16.mxu0 0
        %1006 = vmatmul.mubr.bf16.gmra.mxu0 %v967
        %v1007 = vpop.f32.mrf.mxu0
        %v1008 = vadd.f32 0.0, %v1007
        %v1009 = vpop.f32.mrf.mxu0
        %v1010 = vpop.f32.mrf.mxu0
        %v1011 = vpop.f32.mrf.mxu0
        %1012 = vdwg.mxu0
        %v1014 = vsel %vm741, %v963, 0
        %v1017 = vsel %vm969, %v725, 0
        %1019 = vmatprep.subr.bf16.mxu0 0
        %1020 = vmatpush1.bf16.msra.mxu0 0
        %1021 = vmatprep.subr.bf16.mxu0 0
        %1022 = vmatpush1.bf16.msra.mxu0 0
        %1023 = vmatprep.subr.bf16.mxu0 0
        %1024 = vmatpush1.bf16.msra.mxu0 0
        %1025 = vmatprep.subr.bf16.mxu0 0
        %1026 = vmatpush1.bf16.msra.mxu0 0
        %1027 = vmatprep.subr.bf16.mxu0 0
        %1028 = vmatpush1.bf16.msra.mxu0 0
        %1029 = vmatprep.subr.bf16.mxu0 0
        %1030 = vmatpush1.bf16.msra.mxu0 0
        %1031 = vmatprep.subr.bf16.mxu0 0
        %1032 = vmatpush1.bf16.msra.mxu0 0
        %1033 = vmatprep.subr.bf16.mxu0 0
        %1034 = vmatpush1.bf16.msra.mxu0 %v1017
        %1035 = vmatprep.subr.bf16.mxu0 0
        %1036 = vmatpush2.bf16.msra.mxu0 0
        %1037 = vmatprep.subr.bf16.mxu0 0
        %1038 = vmatpush2.bf16.msra.mxu0 0
        %1039 = vmatprep.subr.bf16.mxu0 0
        %1040 = vmatpush2.bf16.msra.mxu0 0
        %1041 = vmatprep.subr.bf16.mxu0 0
        %1042 = vmatpush2.bf16.msra.mxu0 0
        %1043 = vmatprep.subr.bf16.mxu0 0
        %1044 = vmatpush2.bf16.msra.mxu0 0
        %1045 = vmatprep.subr.bf16.mxu0 0
        %1046 = vmatpush2.bf16.msra.mxu0 0
        %1047 = vmatprep.subr.bf16.mxu0 0
        %1048 = vmatpush2.bf16.msra.mxu0 0
        %1049 = vmatprep.subr.bf16.mxu0 0
        %1050 = vmatpush2.bf16.msra.mxu0 0
        %1051 = vmatprep.mubr.bf16.mxu0 0
        %1052 = vmatmul.mubr.bf16.gmra.mxu0 %v1014
        %v1053 = vpop.f32.mrf.mxu0
        %v1054 = vadd.f32 0.0, %v1053
        %v1055 = vpop.f32.mrf.mxu0
        %v1056 = vpop.f32.mrf.mxu0
        %v1057 = vpop.f32.mrf.mxu0
        %1058 = vdwg.mxu0
        %v1060 = vsel %vm741, %v964, 0
        %v1063 = vsel %vm969, %v728, 0
        %1065 = vmatprep.subr.bf16.mxu0 0
        %1066 = vmatpush1.bf16.msra.mxu0 0
        %1067 = vmatprep.subr.bf16.mxu0 0
        %1068 = vmatpush1.bf16.msra.mxu0 0
        %1069 = vmatprep.subr.bf16.mxu0 0
        %1070 = vmatpush1.bf16.msra.mxu0 0
        %1071 = vmatprep.subr.bf16.mxu0 0
        %1072 = vmatpush1.bf16.msra.mxu0 0
        %1073 = vmatprep.subr.bf16.mxu0 0
        %1074 = vmatpush1.bf16.msra.mxu0 0
        %1075 = vmatprep.subr.bf16.mxu0 0
        %1076 = vmatpush1.bf16.msra.mxu0 0
        %1077 = vmatprep.subr.bf16.mxu0 0
        %1078 = vmatpush1.bf16.msra.mxu0 0
        %1079 = vmatprep.subr.bf16.mxu0 0
        %1080 = vmatpush1.bf16.msra.mxu0 %v1063
        %1081 = vmatprep.subr.bf16.mxu0 0
        %1082 = vmatpush2.bf16.msra.mxu0 0
        %1083 = vmatprep.subr.bf16.mxu0 0
        %1084 = vmatpush2.bf16.msra.mxu0 0
        %1085 = vmatprep.subr.bf16.mxu0 0
        %1086 = vmatpush2.bf16.msra.mxu0 0
        %1087 = vmatprep.subr.bf16.mxu0 0
        %1088 = vmatpush2.bf16.msra.mxu0 0
        %1089 = vmatprep.subr.bf16.mxu0 0
        %1090 = vmatpush2.bf16.msra.mxu0 0
        %1091 = vmatprep.subr.bf16.mxu0 0
        %1092 = vmatpush2.bf16.msra.mxu0 0
        %1093 = vmatprep.subr.bf16.mxu0 0
        %1094 = vmatpush2.bf16.msra.mxu0 0
        %1095 = vmatprep.subr.bf16.mxu0 0
        %1096 = vmatpush2.bf16.msra.mxu0 0
        %1097 = vmatprep.mubr.bf16.mxu0 0
        %1098 = vmatmul.mubr.bf16.gmra.mxu0 %v1060
        %v1099 = vpop.f32.mrf.mxu0
        %v1100 = vadd.f32 0.0, %v1099
        %v1101 = vpop.f32.mrf.mxu0
        %v1102 = vpop.f32.mrf.mxu0
        %v1103 = vpop.f32.mrf.mxu0
        %1104 = vdwg.mxu0
        %v1106 = vsel %vm741, %v965, 0
        %v1109 = vsel %vm969, %v731, 0
        %1111 = vmatprep.subr.bf16.mxu0 0
        %1112 = vmatpush1.bf16.msra.mxu0 0
        %1113 = vmatprep.subr.bf16.mxu0 0
        %1114 = vmatpush1.bf16.msra.mxu0 0
        %1115 = vmatprep.subr.bf16.mxu0 0
        %1116 = vmatpush1.bf16.msra.mxu0 0
        %1117 = vmatprep.subr.bf16.mxu0 0
        %1118 = vmatpush1.bf16.msra.mxu0 0
        %1119 = vmatprep.subr.bf16.mxu0 0
        %1120 = vmatpush1.bf16.msra.mxu0 0
        %1121 = vmatprep.subr.bf16.mxu0 0
        %1122 = vmatpush1.bf16.msra.mxu0 0
        %1123 = vmatprep.subr.bf16.mxu0 0
        %1124 = vmatpush1.bf16.msra.mxu0 0
        %1125 = vmatprep.subr.bf16.mxu0 0
        %1126 = vmatpush1.bf16.msra.mxu0 %v1109
        %1127 = vmatprep.subr.bf16.mxu0 0
        %1128 = vmatpush2.bf16.msra.mxu0 0
        %1129 = vmatprep.subr.bf16.mxu0 0
        %1130 = vmatpush2.bf16.msra.mxu0 0
        %1131 = vmatprep.subr.bf16.mxu0 0
        %1132 = vmatpush2.bf16.msra.mxu0 0
        %1133 = vmatprep.subr.bf16.mxu0 0
        %1134 = vmatpush2.bf16.msra.mxu0 0
        %1135 = vmatprep.subr.bf16.mxu0 0
        %1136 = vmatpush2.bf16.msra.mxu0 0
        %1137 = vmatprep.subr.bf16.mxu0 0
        %1138 = vmatpush2.bf16.msra.mxu0 0
        %1139 = vmatprep.subr.bf16.mxu0 0
        %1140 = vmatpush2.bf16.msra.mxu0 0
        %1141 = vmatprep.subr.bf16.mxu0 0
        %1142 = vmatpush2.bf16.msra.mxu0 0
        %1143 = vmatprep.mubr.bf16.mxu0 0
        %1144 = vmatmul.mubr.bf16.gmra.mxu0 %v1106
        %v1145 = vpop.f32.mrf.mxu0
        %v1146 = vadd.f32 0.0, %v1145
        %v1147 = vpop.f32.mrf.mxu0
        %v1148 = vpop.f32.mrf.mxu0
        %v1149 = vpop.f32.mrf.mxu0
        %1150 = vdwg.mxu0
        %v1151 = vrcp.pop %v952
        %v1152 = vrcp.pop %v955
        %v1153 = vrcp.pop %v958
        %v1154 = vrcp.pop %v961
        %v1155 = vmul.f32 %v1008, %v1151
        %v1156 = vmul.f32 %v1054, %v1152
        %v1157 = vmul.f32 %v1100, %v1153
        %v1158 = vmul.f32 %v1146, %v1154
        %v1159 = vpack.c.bf16 %v1155, %v1155
        %v1161 = vunpack.c.l.s4 1983009808
        %v1162 = vunpack.c.0.s8 %v1161
        %v1163 = vlaneseq
        %v1164 = vshrl.u32 %v1163, 7
        %v1165 = vsub.s32 %v1162, %v1164
        %v1166 = vrot.slane %v1159, %v1165
        %v1167 = vpack.c.bf16 %v1157, %v1157
        %v1169 = vunpack.c.l.s4 1983009808
        %v1170 = vunpack.c.0.s8 %v1169
        %v1171 = vlaneseq
        %v1172 = vshrl.u32 %v1171, 7
        %v1173 = vsub.s32 %v1170, %v1172
        %v1174 = vrot.slane %v1167, %v1173
        %v1175 = vcombine.low %v1166, %v1174
        %v1176 = vcombine.high %v1166, %v1174
        %v1178 = vunpack.c.l.s4 1934713408
        %v1179 = vunpack.c.0.s8 %v1178
        %v1180 = vlaneseq
        %v1181 = vshrl.u32 %v1180, 7
        %v1182 = vsub.s32 %v1179, %v1181
        %v1183 = vrot.slane %v1175, %v1182
        %v1185 = vunpack.c.l.s4 1934713408
        %v1186 = vunpack.c.0.s8 %v1185
        %v1187 = vlaneseq
        %v1188 = vshrl.u32 %v1187, 7
        %v1189 = vsub.s32 %v1186, %v1188
        %v1190 = vrot.slane %v1176, %v1189
        %v1191 = vcombine.high %v1183, 0
        %v1192 = vcombine.high %v1190, 0
        %v1193 = vpack.c.bf16 %v1156, %v1156
        %v1195 = vunpack.c.l.s4 1983009808
        %v1196 = vunpack.c.0.s8 %v1195
        %v1197 = vlaneseq
        %v1198 = vshrl.u32 %v1197, 7
        %v1199 = vsub.s32 %v1196, %v1198
        %v1200 = vrot.slane %v1193, %v1199
        %v1201 = vpack.c.bf16 %v1158, %v1158
        %v1203 = vunpack.c.l.s4 1983009808
        %v1204 = vunpack.c.0.s8 %v1203
        %v1205 = vlaneseq
        %v1206 = vshrl.u32 %v1205, 7
        %v1207 = vsub.s32 %v1204, %v1206
        %v1208 = vrot.slane %v1201, %v1207
        %v1209 = vcombine.low %v1200, %v1208
        %v1210 = vcombine.high %v1200, %v1208
        %v1212 = vunpack.c.l.s4 1934713408
        %v1213 = vunpack.c.0.s8 %v1212
        %v1214 = vlaneseq
        %v1215 = vshrl.u32 %v1214, 7
        %v1216 = vsub.s32 %v1213, %v1215
        %v1217 = vrot.slane %v1209, %v1216
        %v1219 = vunpack.c.l.s4 1934713408
        %v1220 = vunpack.c.0.s8 %v1219
        %v1221 = vlaneseq
        %v1222 = vshrl.u32 %v1221, 7
        %v1223 = vsub.s32 %v1220, %v1222
        %v1224 = vrot.slane %v1210, %v1223
        %v1225 = vcombine.high %v1217, 0
        %v1226 = vcombine.high %v1224, 0
        %v1229 = vpack.i.b16 %v1217, %v1183
        %v1231 = vshrl.u32 %v1183, 16
        %v1232 = vshrl.u32 %v1217, 16
        %v1233 = vpack.i.b16 %v1232, %v1231
        %v1237 = vpack.i.b16 %v1225, %v1191
        %v1239 = vshrl.u32 %v1191, 16
        %v1240 = vshrl.u32 %v1225, 16
        %v1241 = vpack.i.b16 %v1240, %v1239
        %v1245 = vpack.i.b16 %v1224, %v1190
        %v1247 = vshrl.u32 %v1190, 16
        %v1248 = vshrl.u32 %v1224, 16
        %v1249 = vpack.i.b16 %v1248, %v1247
        %v1253 = vpack.i.b16 %v1226, %v1192
        %v1255 = vshrl.u32 %v1192, 16
        %v1256 = vshrl.u32 %v1226, 16
        %v1257 = vpack.i.b16 %v1256, %v1255
        %v1259 = vcombine.low %v1229, %v1245
        %v1261 = vunpack.c.l.s4 1983009808
        %v1262 = vunpack.c.0.s8 %v1261
        %v1263 = vlaneseq
        %v1264 = vshrl.u32 %v1263, 7
        %v1265 = vsub.s32 %v1262, %v1264
        %v1266 = vrot.slane %v1259, %v1265
        %v1267 = vcombine.low %v1237, %v1253
        %v1269 = vunpack.c.l.s4 1983009808
        %v1270 = vunpack.c.0.s8 %v1269
        %v1271 = vlaneseq
        %v1272 = vshrl.u32 %v1271, 7
        %v1273 = vsub.s32 %v1270, %v1272
        %v1274 = vrot.slane %v1267, %v1273
        %v1275 = vcombine.low %v1266, %v1274
        %v1277 = vunpack.c.l.s4 1934713408
        %v1278 = vunpack.c.0.s8 %v1277
        %v1279 = vlaneseq
        %v1280 = vshrl.u32 %v1279, 7
        %v1281 = vsub.s32 %v1278, %v1280
        %v1282 = vrot.slane %v1275, %v1281
        %v1283 = vcombine.high %v1282, 0
        %v1284 = vcombine.low %v1233, %v1249
        %v1286 = vunpack.c.l.s4 1983009808
        %v1287 = vunpack.c.0.s8 %v1286
        %v1288 = vlaneseq
        %v1289 = vshrl.u32 %v1288, 7
        %v1290 = vsub.s32 %v1287, %v1289
        %v1291 = vrot.slane %v1284, %v1290
        %v1292 = vcombine.low %v1241, %v1257
        %v1294 = vunpack.c.l.s4 1983009808
        %v1295 = vunpack.c.0.s8 %v1294
        %v1296 = vlaneseq
        %v1297 = vshrl.u32 %v1296, 7
        %v1298 = vsub.s32 %v1295, %v1297
        %v1299 = vrot.slane %v1292, %v1298
        %v1300 = vcombine.low %v1291, %v1299
        %v1302 = vunpack.c.l.s4 1934713408
        %v1303 = vunpack.c.0.s8 %v1302
        %v1304 = vlaneseq
        %v1305 = vshrl.u32 %v1304, 7
        %v1306 = vsub.s32 %v1303, %v1305
        %v1307 = vrot.slane %v1300, %v1306
        %v1308 = vcombine.high %v1307, 0
        %v1311 = vpack.i.b16 %v1307, %v1282
        %v1312 = vshrl.u32 %v1282, 16
        %v1313 = vshrl.u32 %v1307, 16
        %v1314 = vpack.i.b16 %v1313, %v1312
        %v1317 = vpack.i.b16 %v1308, %v1283
        %v1318 = vshrl.u32 %v1283, 16
        %v1319 = vshrl.u32 %v1308, 16
        %v1320 = vpack.i.b16 %v1319, %v1318
        %1321 = vrot.lane.b32.xlu0 %v1314, 8
        %v1322 = vpop.permute.xlu0 %1321
        %1323 = vrot.lane.b32.xlu0 %v1317, 16
        %v1324 = vpop.permute.xlu0 %1323
        %1325 = vrot.lane.b32.xlu0 %v1320, 24
        %v1326 = vpop.permute.xlu0 %1325
        %v1329 = vsel %vm741, %v1311, %v1322
        %vm1330 = vcmask 130048
        %v1332 = vsel %vm1330, %v1329, %v1324
        %vm1333 = vcmask 195584
        %v1335 = vsel %vm1333, %v1332, %v1326
        %v1336 = vld [vmem:[#allocation7] sm:$0xf]
        %v1337 = vld [vmem:[#allocation7 + $0x4] sm:$0xf]
        %v1338 = vld [vmem:[#allocation7 + $0x8] sm:$0xf]
        %v1339 = vld [vmem:[#allocation7 + $0xc] sm:$0xf]
        %v1344 = vunpack.c.l.b16 %v1336
        %v1345 = vunpack.c.l.b16 %v1337
        %v1346 = vunpack.c.l.b16 %v1338
        %v1347 = vunpack.c.l.b16 %v1339
        %v1348 = vpack.c.b16 %v1345, %v1344
        %v1349 = vpack.c.b16 %v1347, %v1346
        %v1352 = vsel %vm335, %v1335, 0
        %1354 = vmatprep.subr.bf16.mxu0 0
        %1355 = vmatpush1.bf16.msra.mxu0 0
        %1356 = vmatprep.subr.bf16.mxu0 0
        %1357 = vmatpush1.bf16.msra.mxu0 0
        %1358 = vmatprep.subr.bf16.mxu0 0
        %1359 = vmatpush1.bf16.msra.mxu0 0
        %1360 = vmatprep.subr.bf16.mxu0 0
        %1361 = vmatpush1.bf16.msra.mxu0 0
        %1362 = vmatprep.subr.bf16.mxu0 0
        %1363 = vmatpush1.bf16.msra.mxu0 0
        %1364 = vmatprep.subr.bf16.mxu0 0
        %1365 = vmatpush1.bf16.msra.mxu0 0
        %1366 = vmatprep.subr.bf16.mxu0 0
        %1367 = vmatpush1.bf16.msra.mxu0 %v1349
        %1368 = vmatprep.subr.bf16.mxu0 0
        %1369 = vmatpush1.bf16.msra.mxu0 %v1348
        %1370 = vmatprep.subr.bf16.mxu0 0
        %1371 = vmatpush2.bf16.msra.mxu0 0
        %1372 = vmatprep.subr.bf16.mxu0 0
        %1373 = vmatpush2.bf16.msra.mxu0 0
        %1374 = vmatprep.subr.bf16.mxu0 0
        %1375 = vmatpush2.bf16.msra.mxu0 0
        %1376 = vmatprep.subr.bf16.mxu0 0
        %1377 = vmatpush2.bf16.msra.mxu0 0
        %1378 = vmatprep.subr.bf16.mxu0 0
        %1379 = vmatpush2.bf16.msra.mxu0 0
        %1380 = vmatprep.subr.bf16.mxu0 0
        %1381 = vmatpush2.bf16.msra.mxu0 0
        %1382 = vmatprep.subr.bf16.mxu0 0
        %1383 = vmatpush2.bf16.msra.mxu0 0
        %1384 = vmatprep.subr.bf16.mxu0 0
        %1385 = vmatpush2.bf16.msra.mxu0 0
        %1386 = vmatprep.mubr.bf16.mxu0 0
        %1387 = vmatmul.mubr.bf16.gmra.mxu0 %v1352
        %v1388 = vpop.f32.mrf.mxu0
        %v1389 = vadd.f32 0.0, %v1388
        %v1390 = vpop.f32.mrf.mxu0
        %v1391 = vpop.f32.mrf.mxu0
        %v1392 = vpop.f32.mrf.mxu0
        %1393 = vdwg.mxu0
        %v1394 = vld [vmem:[%s309] sm:$0x1]
        %1395 = vxpose.xlu0.b32.start [1/16] %v1394, 128
        %1396 = vxpose.xlu0.b32.cont [2/16] 0.0, 128
        %1397 = vxpose.xlu0.b32.cont [3/16] 0.0, 128
        %1398 = vxpose.xlu0.b32.cont [4/16] 0.0, 128
        %1399 = vxpose.xlu0.b32.cont [5/16] 0.0, 128
        %1400 = vxpose.xlu0.b32.cont [6/16] 0.0, 128
        %1401 = vxpose.xlu0.b32.cont [7/16] 0.0, 128
        %1402 = vxpose.xlu0.b32.cont [8/16] 0.0, 128
        %1403 = vxpose.xlu0.b32.cont [9/16] 0.0, 128
        %1404 = vxpose.xlu0.b32.cont [10/16] 0.0, 128
        %1405 = vxpose.xlu0.b32.cont [11/16] 0.0, 128
        %1406 = vxpose.xlu0.b32.cont [12/16] 0.0, 128
        %1407 = vxpose.xlu0.b32.cont [13/16] 0.0, 128
        %1408 = vxpose.xlu0.b32.cont [14/16] 0.0, 128
        %1409 = vxpose.xlu0.b32.cont [15/16] 0.0, 128
        %1410 = vxpose.xlu0.b32.end [16/16] 0.0, 128
        %v1411 = vpop.trf.xlu0
        %v1412 = vpop.trf.xlu0
        %v1413 = vpop.trf.xlu0
        %v1414 = vpop.trf.xlu0
        %v1415 = vpop.trf.xlu0
        %v1416 = vpop.trf.xlu0
        %v1417 = vpop.trf.xlu0
        %v1418 = vpop.trf.xlu0
        %v1419 = vpop.trf.xlu0
        %v1420 = vpop.trf.xlu0
        %v1421 = vpop.trf.xlu0
        %v1422 = vpop.trf.xlu0
        %v1423 = vpop.trf.xlu0
        %v1424 = vpop.trf.xlu0
        %v1425 = vpop.trf.xlu0
        %v1426 = vpop.trf.xlu0
        %1428 = vset.pattern.permute.xlu0 0
        %1429 = vperm.xlu0 %1428, %v1411
        %v1430 = vpop.permute.xlu0 %1429
        %v1432 = vmul.f32 %v1389, %v1430
        %v1433 = vld [vmem:[%s4] sm:$0x1]
        %v1435 = vlaneseq
        %v1436 = vshrl.u32 %v1435, 7
        %v1437 = vsub.s32 0, %v1436
        %v1438 = vrot.slane %v1433, %v1437
        %v1440 = vadd.f32 %v1432, %v1438
        %1441 = vst.msk [vmem:[%s306] sm:$0xff] %vm335, %v1440
        %s1442 = sand.u32 %s168, 1
        %s1443 = scalar_lea.sflag [#allocation4], %s1442
        %s1444 = sand.u32 %s168, 1
        %s1445 = smul.addr %s1444, 8
        %s1446 = scalar_lea.vmem [#allocation8], %s1445
        // Predicated region
        $region57: #{tpu_custom_call.1} parent=43 // pred_check
          %p1447 = pneg %p178
        $region58: #{tpu_custom_call.1} parent=43 // pred_check_branch
          %1449 = sbr.rel (%p1447) target = $region60
        $region59: #{tpu_custom_call.1} parent=43 // pred_region
          %s1451 = ssub.s32 128, 128
          %1452 = vsyncadd %s1443, %s1451
          %s1453 = smul.addr %s24, 128
          %s1454 = scalar_lea.hbm %s6, %s1453
          %s1456 = sshll.u32 %s1446, 4
          %s1457 = int_to_ptr.vmem [resolvable:$true] %s1456
          %1459 = dma.vmem_to_hbm [thread:$0]  %s1457, 128, %s1454, %s1443
        $region60: #{tpu_custom_call.1} parent=43 // pred_fallthru
          _
      $region44: #{tpu_custom_call.1} parent=5 // pred_fallthru
        _
      %p1460 = scmp.le.s32.totalorder 2, %s19
      // Predicated region
      $region61: #{tpu_custom_call.1} parent=5 // pred_check
        %p1461 = pneg %p1460
      $region62: #{tpu_custom_call.1} parent=5 // pred_check_branch
        %1463 = sbr.rel (%p1461) target = $region64
      $region63: #{tpu_custom_call.1} parent=5 // pred_region
        %s1464 = ssub.s32 %s19, 2
        // Predicated region
        $region65: #{tpu_custom_call.1} parent=63 // pred_check
          %p1465 = pneg %p184
        $region66: #{tpu_custom_call.1} parent=63 // pred_check_branch
          %1467 = sbr.rel (%p1465) target = $region68
        $region67: #{tpu_custom_call.1} parent=63 // pred_region
          %s1468 = sand.u32 %s169, 1
          %s1469 = scalar_lea.sflag [#allocation4], %s1468
          %s1470 = sand.u32 %s169, 1
          %s1471 = smul.addr %s1470, 8
          %s1472 = scalar_lea.vmem [#allocation8], %s1471
          %1473 = dma.done %s1469, 128
        $region68: #{tpu_custom_call.1} parent=63 // pred_fallthru
          _
      $region64: #{tpu_custom_call.1} parent=5 // pred_fallthru
        _
    $region6: #{tpu_custom_call.1} parent=1 // loop_footer
      %s23 = sadd.s32 1, %s19
    $region7: #{tpu_custom_call.1} parent=1 // loop_footer_branch
      %18 = sbr.rel target = $region3
    $region8: #{tpu_custom_call.1} parent=1 // loop_exit
      _
    %1474 = vsyncpa [#allocation3], 1
    %s1475 = scalar_lea.sflag [#allocation3], 1
    %1476 = vsyncpa %s1475, 1
    %1477 = vsyncpa [#allocation6], 1
    %1478 = vsyncpa [#allocation4], 1
    %s1479 = scalar_lea.sflag [#allocation4], 1
    %1480 = vsyncpa %s1479, 1

</llo_original>
